<compile_context>
chip_gen: v7x
topology: tpu7x:2x2x1
jax: 0.10.0
libtpu: 0.0.40
codegen_flags: <defaults>
</compile_context>

<pallas_src>
import functools

import jax
import jax.numpy as jnp
from jax.experimental import pallas as pl
from jax.experimental.pallas import tpu as pltpu


def _round_up(x: int, m: int) -> int:
    return ((x + m - 1) // m) * m


def _attention_kernel(dec_ref, enc_ref, ctx_ref, attn_ref, *, s_valid):
    # dec_ref: (TB, Hp)   enc_ref: (TB, Sp, Hp)  -- native dtype, no f32 copy.
    dec = dec_ref[...]
    enc = enc_ref[...]
    tb, s_pad, h_pad = enc.shape

    # scores[b, s] = sum_h dec[b, h] * enc[b, s, h]   (MXU, f32 accumulation).
    # The q=1 axis is inserted only around the einsum (rank-3 x rank-3 batched
    # matmul is the proven Mosaic pattern); everything downstream is dense 2-D.
    scores = jnp.einsum(
        "bqh,bsh->bqs", dec.reshape(tb, 1, h_pad), enc,
        preferred_element_type=jnp.float32,
    ).reshape(tb, s_pad)                               # (TB, Sp) f32, dense

    # Zero-padded H columns contribute nothing, but padded S positions must not
    # participate in the softmax -> mask them to a huge negative value.
    if s_valid < s_pad:
        col = jax.lax.broadcasted_iota(jnp.int32, (tb, s_pad), 1)
        scores = jnp.where(col < s_valid, scores, jnp.finfo(jnp.float32).min)

    # Numerically stable softmax over S.  Exact divide (no approx reciprocal):
    # returned probabilities sum to 1 per row, matching torch.softmax.
    scores = scores - jnp.max(scores, axis=-1, keepdims=True)
    e = jnp.exp(scores)
    probs = e / jnp.sum(e, axis=-1, keepdims=True)     # (TB, Sp) f32

    # context[b, h] = sum_s probs[b, s] * enc[b, s, h]   (MXU, f32 accumulation)
    ctx = jnp.einsum(
        "bqs,bsh->bqh", probs.astype(enc.dtype).reshape(tb, 1, s_pad), enc,
        preferred_element_type=jnp.float32,
    ).reshape(tb, h_pad)                               # (TB, Hp) f32

    ctx_ref[...] = ctx.astype(ctx_ref.dtype)
    attn_ref[...] = probs.astype(attn_ref.dtype)


def _tpu_vmem_capacity_bytes() -> int:
    """Physical per-core VMEM; conservative (v7x-sized) fallback off-TPU."""
    try:
        return int(pltpu.get_tpu_info().vmem_capacity_bytes)
    except Exception:
        return 64 * 1024 * 1024


def _choose_block_b(b, s_pad, h_pad, enc_it, dec_it, out_it, budget_bytes):
    """Largest 8-aligned batch tile whose resident footprint fits the budget.

    Footprint counts double-buffered enc/dec inputs and ctx/attn outputs plus a
    generous allowance for the f32 softmax temporaries.  Also keeps at least 2
    (4 for larger B) grid steps so v7x megacore sharding and the DMA/compute
    pipeline have work to overlap.
    """
    per_row = 2 * (s_pad * h_pad * enc_it       # enc (double-buffered)
                   + h_pad * dec_it             # dec
                   + h_pad * out_it             # ctx out
                   + s_pad * out_it)            # attn out
    per_row += 4 * (10 * s_pad + 4 * h_pad)     # f32 in-kernel temporaries
    cap_rows = max(8, (budget_bytes // per_row) // 8 * 8)

    if b > 8:
        min_steps = 4 if b > 32 else 2
        steps_cap = max(8, (pl.cdiv(b, min_steps) // 8) * 8)
        cap_rows = min(cap_rows, steps_cap)

    return min(cap_rows, _round_up(b, 8))


def attention(decoder_state_t, encoder_outputs, *, block_b=None,
              vmem_limit_bytes=None):
    """Pallas TPU implementation of the dot-product Attention module."""
    b, s, h = encoder_outputs.shape
    assert decoder_state_t.shape == (b, h)
    out_dtype = decoder_state_t.dtype

    # Lane-dense layout: pad S and H up to multiples of 128.  Zero-padded H is
    # harmless for the contraction; padded S positions are masked in-kernel.
    s_pad = _round_up(s, 128)
    h_pad = _round_up(h, 128)

    physical_vmem = _tpu_vmem_capacity_bytes()
    budget = (physical_vmem * 3) // 4           # ~48 MiB v7x, ~96 MiB v5e/v6e

    if block_b is None:
        block_b = _choose_block_b(
            b, s_pad, h_pad,
            jnp.dtype(encoder_outputs.dtype).itemsize,
            jnp.dtype(decoder_state_t.dtype).itemsize,
            jnp.dtype(out_dtype).itemsize,
            budget,
        )
    block_b = min(max(8, _round_up(int(block_b), 8)), _round_up(b, 8))

    if vmem_limit_bytes is None:
        # Coordinated with the tile budget, with headroom for compiler scratch,
        # and always below physical VMEM (64 MiB on v7x, 128 MiB on v5e/v6e).
        vmem_limit_bytes = min((physical_vmem * 7) // 8, budget + (16 << 20))

    # Pad B so every grid block is fully in-bounds (tail rows sliced off after).
    b_pad = _round_up(b, block_b)
    grid = (b_pad // block_b,)

    dec = decoder_state_t
    enc = encoder_outputs
    if (b_pad, h_pad) != (b, h):
        dec = jnp.pad(dec, ((0, b_pad - b), (0, h_pad - h)))
    if (b_pad, s_pad, h_pad) != (b, s, h):
        enc = jnp.pad(enc, ((0, b_pad - b), (0, s_pad - s), (0, h_pad - h)))

    kernel = functools.partial(_attention_kernel, s_valid=s)

    # TODO(synk): for very long S*H (notably v7x's 64 MiB VMEM) add an inner
    # "arbitrary" grid axis over S tiles with online-softmax m/l/acc scratch so
    # VMEM use is bounded independently of S and large block_b is preserved.
    ctx_p, attn_p = pl.pallas_call(
        kernel,
        out_shape=(
            jax.ShapeDtypeStruct((b_pad, h_pad), out_dtype),   # context
            jax.ShapeDtypeStruct((b_pad, s_pad), out_dtype),   # attention probs
        ),
        grid=grid,
        in_specs=[
            pl.BlockSpec((block_b, h_pad), lambda i: (i, 0)),
            pl.BlockSpec((block_b, s_pad, h_pad), lambda i: (i, 0, 0)),
        ],
        out_specs=(
            pl.BlockSpec((block_b, h_pad), lambda i: (i, 0)),
            pl.BlockSpec((block_b, s_pad), lambda i: (i, 0)),
        ),
        compiler_params=pltpu.CompilerParams(
            dimension_semantics=("parallel",),
            vmem_limit_bytes=int(vmem_limit_bytes),
        ),
    )(dec, enc)

    return ctx_p[:b, :h], attn_p[:b, :s]


def _attention_ref(decoder_state_t, encoder_outputs):
    # Pure-JAX reference (mirrors the PyTorch forward exactly).
    scores = jnp.sum(decoder_state_t[:, None, :] * encoder_outputs, axis=-1)
    probs = jax.nn.softmax(scores, axis=-1)
    context = jnp.sum(probs[:, :, None] * encoder_outputs, axis=1)
    return context, probs


if __name__ == "__main__":
    # Small deterministic inputs: batch=2, seq=8, hidden=32.
    key = jax.random.PRNGKey(0)
    k1, k2 = jax.random.split(key)
    B, S, H = 2, 8, 32
    decoder_state_t = jax.random.normal(k1, (B, H), dtype=jnp.float32)
    encoder_outputs = jax.random.normal(k2, (B, S, H), dtype=jnp.float32)

    ctx, attn = attention(decoder_state_t, encoder_outputs)
    jax.block_until_ready((ctx, attn))

    ctx_ref, attn_ref = _attention_ref(decoder_state_t, encoder_outputs)
    assert ctx.shape == (B, H) and attn.shape == (B, S)
    # Tolerance allows for reduced-precision MXU passes on some generations.
    assert jnp.allclose(ctx, ctx_ref, atol=5e-3, rtol=5e-3)
    assert jnp.allclose(attn, attn_ref, atol=5e-3, rtol=5e-3)
    # Exact-divide softmax: every row of probabilities sums to 1.
    assert jnp.allclose(jnp.sum(attn, axis=-1), 1.0, atol=1e-5)

    print("KERNEL_OK")
</pallas_src>

<mosaic_0001>
module attributes {stable_mosaic.version = 11 : i64} {
  func.func @_attention_kernel(%arg0: i32, %arg1: memref<8x128xf32, #tpu.memory_space<vmem>>, %arg2: memref<8x128x128xf32, #tpu.memory_space<vmem>>, %arg3: memref<8x128xf32, #tpu.memory_space<vmem>>, %arg4: memref<8x128xf32, #tpu.memory_space<vmem>>) attributes {dimension_semantics = [#tpu.dimension_semantics<parallel>], iteration_bounds = array<i64: 1>, scalar_prefetch = 0 : i64, scratch_operands = 0 : i64, tpu.core_type = #tpu.core_type<tc>, window_params = [{transform_indices = @transform_0, window_bounds = array<i64: 8, 128>}, {transform_indices = @transform_1, window_bounds = array<i64: 8, 128, 128>}, {transform_indices = @transform_2, window_bounds = array<i64: 8, 128>}, {transform_indices = @transform_3, window_bounds = array<i64: 8, 128>}]} {
    %c0 = arith.constant 0 : index
    %c0_0 = arith.constant 0 : index
    %0 = vector.load %arg1[%c0, %c0_0] : memref<8x128xf32, #tpu.memory_space<vmem>>, vector<8x128xf32>
    %c0_1 = arith.constant 0 : index
    %c0_2 = arith.constant 0 : index
    %c0_3 = arith.constant 0 : index
    %1 = vector.load %arg2[%c0_1, %c0_2, %c0_3] : memref<8x128x128xf32, #tpu.memory_space<vmem>>, vector<8x128x128xf32>
    %2 = vector.shape_cast %0 : vector<8x128xf32> to vector<8x1x128xf32>
    "tpu.trace_start"() <{level = 10 : i32, message = "bqh,bsh->bqs"}> : () -> ()
    %cst = arith.constant dense<0.000000e+00> : vector<8x1x128xf32>
    %3 = tpu.matmul %2, %1, %cst {dimension_numbers = #tpu.dot_dimension_numbers<[2], [2], [1], [1], [0, 0, 0, 1, 1, 1], [0], [0]>} : vector<8x1x128xf32>, vector<8x128x128xf32>, vector<8x1x128xf32> -> vector<8x1x128xf32>
    "tpu.trace_stop"() : () -> ()
    %4 = vector.shape_cast %3 : vector<8x1x128xf32> to vector<8x128xf32>
    %5 = tpu.iota {dimensions = array<i32: 1>} : vector<8x128xi32>
    %c8_i32 = arith.constant 8 : i32
    %6 = vector.broadcast %c8_i32 : i32 to vector<8x128xi32>
    %7 = arith.cmpi slt, %5, %6 : vector<8x128xi32>
    %cst_4 = arith.constant -3.40282347E+38 : f32
    %8 = vector.broadcast %cst_4 : f32 to vector<8x128xf32>
    %9 = arith.select %7, %4, %8 : vector<8x128xi1>, vector<8x128xf32>
    %cst_5 = arith.constant dense<0xFF800000> : vector<8xf32>
    %10 = vector.multi_reduction <maximumf>, %9, %cst_5 [1] : vector<8x128xf32> to vector<8xf32>
    %11 = vector.shape_cast %10 : vector<8xf32> to vector<8x1xf32>
    %12 = vector.broadcast %11 : vector<8x1xf32> to vector<8x128xf32>
    %13 = arith.subf %9, %12 : vector<8x128xf32>
    %14 = math.exp %13 : vector<8x128xf32>
    %cst_6 = arith.constant dense<0.000000e+00> : vector<8xf32>
    %15 = vector.multi_reduction <add>, %14, %cst_6 [1] : vector<8x128xf32> to vector<8xf32>
    %16 = vector.shape_cast %15 : vector<8xf32> to vector<8x1xf32>
    %17 = vector.broadcast %16 : vector<8x1xf32> to vector<8x128xf32>
    %18 = arith.divf %14, %17 : vector<8x128xf32>
    %19 = vector.shape_cast %18 : vector<8x128xf32> to vector<8x1x128xf32>
    "tpu.trace_start"() <{level = 10 : i32, message = "bqs,bsh->bqh"}> : () -> ()
    %cst_7 = arith.constant dense<0.000000e+00> : vector<8x1x128xf32>
    %20 = tpu.matmul %19, %1, %cst_7 {dimension_numbers = #tpu.dot_dimension_numbers<[2], [1], [1], [2], [0, 0, 0, 1, 1, 2], [0], [0]>} : vector<8x1x128xf32>, vector<8x128x128xf32>, vector<8x1x128xf32> -> vector<8x1x128xf32>
    "tpu.trace_stop"() : () -> ()
    %21 = vector.shape_cast %20 : vector<8x1x128xf32> to vector<8x128xf32>
    %c0_8 = arith.constant 0 : index
    %c0_9 = arith.constant 0 : index
    %22 = vector.load %arg3[%c0_8, %c0_9] : memref<8x128xf32, #tpu.memory_space<vmem>>, vector<8x128xf32>
    tpu.vector_store %arg3[%c0_8, %c0_9], %21 {strides = array<i32>} : memref<8x128xf32, #tpu.memory_space<vmem>>, vector<8x128xf32>,
    %c0_10 = arith.constant 0 : index
    %c0_11 = arith.constant 0 : index
    %23 = vector.load %arg4[%c0_10, %c0_11] : memref<8x128xf32, #tpu.memory_space<vmem>>, vector<8x128xf32>
    tpu.vector_store %arg4[%c0_10, %c0_11], %18 {strides = array<i32>} : memref<8x128xf32, #tpu.memory_space<vmem>>, vector<8x128xf32>,
    return
  }
  func.func @transform_0(%arg0: i32) -> (i32, i32) {
    %c0_i32 = arith.constant 0 : i32
    %c0_i32_0 = arith.constant 0 : i32
    return %arg0, %c0_i32 : i32, i32
  }
  func.func @transform_1(%arg0: i32) -> (i32, i32, i32) {
    %c0_i32 = arith.constant 0 : i32
    %c0_i32_0 = arith.constant 0 : i32
    %c0_i32_1 = arith.constant 0 : i32
    return %arg0, %c0_i32, %c0_i32_0 : i32, i32, i32
  }
  func.func @transform_2(%arg0: i32) -> (i32, i32) {
    %c0_i32 = arith.constant 0 : i32
    %c0_i32_0 = arith.constant 0 : i32
    return %arg0, %c0_i32 : i32, i32
  }
  func.func @transform_3(%arg0: i32) -> (i32, i32) {
    %c0_i32 = arith.constant 0 : i32
    %c0_i32_0 = arith.constant 0 : i32
    return %arg0, %c0_i32 : i32, i32
  }
}

</mosaic_0001>

<llo_original>
// kernel: tpu_custom_call.1
$region0: #{tpu_custom_call.1}
  #allocation0 [shape = 'u32[]', space=smem, size = 0x4, offset = 0x4, fixed_abs, tag = 'smem constant byte address 0x4 - core index']
  #allocation1 [shape = 'u32[144,128]{1,0:T(1,128)}', space=vmem, size = 0x12000, scoped, tag = 'internal scratch']
  %s0 = inlined_call_operand.hbm [shape: f32[8,128], index: 0, kind: input, shape index: {}]
  %s1 = inlined_call_operand.hbm [shape: f32[8,128,128], index: 1, kind: input, shape index: {}]
  %s2 = inlined_call_operand.hbm [shape: f32[8,128], index: 2, kind: output, shape index: {0}]
  %s3 = inlined_call_operand.hbm [shape: f32[8,128], index: 3, kind: output, shape index: {1}]
  %4 = xla_tuple %s2, %s3
  %s5 = sld [smem:[#allocation0]]
  $region34: #{tpu_custom_call.1} parent=0
    _
  %s7 = ssub.s32 1, %s5
  %s8 = scalar_select 0, %s7, %s5
  $region1: #{tpu_custom_call.1} parent=0
    #allocation2 [shape = 'u8[4096]{0}', space=vmem, size = 0x1000, scoped, tag = 'input window, operand 0, single buffered']
    #allocation3 [shape = 's32[1]{0}', space=sflag, size = 0x4, scoped, tag = 'scoped memory for tpu_custom_call.1']
    #allocation4 [shape = 's32[1]{0}', space=sflag, size = 0x4, scoped, tag = 'scoped memory for tpu_custom_call.1']
    #allocation5 [shape = 'u8[524288]{0}', space=vmem, size = 0x80000, scoped, tag = 'input window, operand 1, single buffered']
    #allocation6 [shape = 's32[1]{0}', space=sflag, size = 0x4, scoped, tag = 'scoped memory for tpu_custom_call.1']
    #allocation7 [shape = 'u8[4096]{0}', space=vmem, size = 0x1000, scoped, tag = 'output window, operand 0, single buffered']
    #allocation8 [shape = 'u8[4096]{0}', space=vmem, size = 0x1000, scoped, tag = 'output window, operand 1, single buffered']
    #allocation9 [shape = 's32[1]{0}', space=sflag, size = 0x4, scoped, tag = 'scoped memory for tpu_custom_call.1']
    %9 = vsyncpa [#allocation3], 0
    %10 = vsyncpa [#allocation6], 0
    %11 = vsyncpa [#allocation4], 0
    %12 = vsyncpa [#allocation9], 0
    // Predicated region
    $region2: #{tpu_custom_call.1} parent=1 // pred_check
      _
    $region3: #{tpu_custom_call.1} parent=1 // pred_check_branch
      %14 = sbr.rel (0) target = $region5
    $region4: #{tpu_custom_call.1} parent=1 // pred_region
      %s16 = ssub.s32 128, 128
      %17 = vsyncadd [#allocation3], %s16
      %s19 = sshll.u32 [#allocation2], 4
      %s20 = int_to_ptr.vmem [resolvable:$true] %s19
      %22 = dma.hbm_to_vmem [thread:$0]  %s0, 128, %s20, [#allocation3]
    $region5: #{tpu_custom_call.1} parent=1 // pred_fallthru
      _
    // Predicated region
    $region6: #{tpu_custom_call.1} parent=1 // pred_check
      _
    $region7: #{tpu_custom_call.1} parent=1 // pred_check_branch
      %24 = sbr.rel (0) target = $region9
    $region8: #{tpu_custom_call.1} parent=1 // pred_region
      %s26 = ssub.s32 16384, 16384
      %27 = vsyncadd [#allocation6], %s26
      %s28 = sshll.u32 [#allocation5], 4
      %s29 = int_to_ptr.vmem [resolvable:$true] %s28
      %34 = dma.hbm_to_vmem [thread:$0]  %s1, 16384, %s29, [#allocation6], 128, 128, 8
    $region9: #{tpu_custom_call.1} parent=1 // pred_fallthru
      _
    // Predicated region
    $region10: #{tpu_custom_call.1} parent=1 // pred_check
      _
    $region11: #{tpu_custom_call.1} parent=1 // pred_check_branch
      %36 = sbr.rel (0) target = $region13
    $region12: #{tpu_custom_call.1} parent=1 // pred_region
      %37 = dma.done [#allocation3], 128
    $region13: #{tpu_custom_call.1} parent=1 // pred_fallthru
      _
    // Predicated region
    $region14: #{tpu_custom_call.1} parent=1 // pred_check
      _
    $region15: #{tpu_custom_call.1} parent=1 // pred_check_branch
      %39 = sbr.rel (0) target = $region17
    $region16: #{tpu_custom_call.1} parent=1 // pred_region
      %40 = dma.done [#allocation6], 16384
    $region17: #{tpu_custom_call.1} parent=1 // pred_fallthru
      _
    %v41 = vld [vmem:[#allocation2] sm:$0xff]
    %v42 = vld [vmem:[#allocation5] sm:$0xff]
    %v43 = vld [vmem:[#allocation5 + $0x8] sm:$0xff]
    %v44 = vld [vmem:[#allocation5 + $0x10] sm:$0xff]
    %v45 = vld [vmem:[#allocation5 + $0x18] sm:$0xff]
    %v46 = vld [vmem:[#allocation5 + $0x20] sm:$0xff]
    %v47 = vld [vmem:[#allocation5 + $0x28] sm:$0xff]
    %v48 = vld [vmem:[#allocation5 + $0x30] sm:$0xff]
    %v49 = vld [vmem:[#allocation5 + $0x38] sm:$0xff]
    %v50 = vld [vmem:[#allocation5 + $0x40] sm:$0xff]
    %v51 = vld [vmem:[#allocation5 + $0x48] sm:$0xff]
    %v52 = vld [vmem:[#allocation5 + $0x50] sm:$0xff]
    %v53 = vld [vmem:[#allocation5 + $0x58] sm:$0xff]
    %v54 = vld [vmem:[#allocation5 + $0x60] sm:$0xff]
    %v55 = vld [vmem:[#allocation5 + $0x68] sm:$0xff]
    %v56 = vld [vmem:[#allocation5 + $0x70] sm:$0xff]
    %v57 = vld [vmem:[#allocation5 + $0x78] sm:$0xff]
    %v58 = vld [vmem:[#allocation5 + $0x80] sm:$0xff]
    %v59 = vld [vmem:[#allocation5 + $0x88] sm:$0xff]
    %v60 = vld [vmem:[#allocation5 + $0x90] sm:$0xff]
    %v61 = vld [vmem:[#allocation5 + $0x98] sm:$0xff]
    %v62 = vld [vmem:[#allocation5 + $0xa0] sm:$0xff]
    %v63 = vld [vmem:[#allocation5 + $0xa8] sm:$0xff]
    %v64 = vld [vmem:[#allocation5 + $0xb0] sm:$0xff]
    %v65 = vld [vmem:[#allocation5 + $0xb8] sm:$0xff]
    %v66 = vld [vmem:[#allocation5 + $0xc0] sm:$0xff]
    %v67 = vld [vmem:[#allocation5 + $0xc8] sm:$0xff]
    %v68 = vld [vmem:[#allocation5 + $0xd0] sm:$0xff]
    %v69 = vld [vmem:[#allocation5 + $0xd8] sm:$0xff]
    %v70 = vld [vmem:[#allocation5 + $0xe0] sm:$0xff]
    %v71 = vld [vmem:[#allocation5 + $0xe8] sm:$0xff]
    %v72 = vld [vmem:[#allocation5 + $0xf0] sm:$0xff]
    %v73 = vld [vmem:[#allocation5 + $0xf8] sm:$0xff]
    %v74 = vld [vmem:[#allocation5 + $0x100] sm:$0xff]
    %v75 = vld [vmem:[#allocation5 + $0x108] sm:$0xff]
    %v76 = vld [vmem:[#allocation5 + $0x110] sm:$0xff]
    %v77 = vld [vmem:[#allocation5 + $0x118] sm:$0xff]
    %v78 = vld [vmem:[#allocation5 + $0x120] sm:$0xff]
    %v79 = vld [vmem:[#allocation5 + $0x128] sm:$0xff]
    %v80 = vld [vmem:[#allocation5 + $0x130] sm:$0xff]
    %v81 = vld [vmem:[#allocation5 + $0x138] sm:$0xff]
    %v82 = vld [vmem:[#allocation5 + $0x140] sm:$0xff]
    %v83 = vld [vmem:[#allocation5 + $0x148] sm:$0xff]
    %v84 = vld [vmem:[#allocation5 + $0x150] sm:$0xff]
    %v85 = vld [vmem:[#allocation5 + $0x158] sm:$0xff]
    %v86 = vld [vmem:[#allocation5 + $0x160] sm:$0xff]
    %v87 = vld [vmem:[#allocation5 + $0x168] sm:$0xff]
    %v88 = vld [vmem:[#allocation5 + $0x170] sm:$0xff]
    %v89 = vld [vmem:[#allocation5 + $0x178] sm:$0xff]
    %v90 = vld [vmem:[#allocation5 + $0x180] sm:$0xff]
    %v91 = vld [vmem:[#allocation5 + $0x188] sm:$0xff]
    %v92 = vld [vmem:[#allocation5 + $0x190] sm:$0xff]
    %v93 = vld [vmem:[#allocation5 + $0x198] sm:$0xff]
    %v94 = vld [vmem:[#allocation5 + $0x1a0] sm:$0xff]
    %v95 = vld [vmem:[#allocation5 + $0x1a8] sm:$0xff]
    %v96 = vld [vmem:[#allocation5 + $0x1b0] sm:$0xff]
    %v97 = vld [vmem:[#allocation5 + $0x1b8] sm:$0xff]
    %v98 = vld [vmem:[#allocation5 + $0x1c0] sm:$0xff]
    %v99 = vld [vmem:[#allocation5 + $0x1c8] sm:$0xff]
    %v100 = vld [vmem:[#allocation5 + $0x1d0] sm:$0xff]
    %v101 = vld [vmem:[#allocation5 + $0x1d8] sm:$0xff]
    %v102 = vld [vmem:[#allocation5 + $0x1e0] sm:$0xff]
    %v103 = vld [vmem:[#allocation5 + $0x1e8] sm:$0xff]
    %v104 = vld [vmem:[#allocation5 + $0x1f0] sm:$0xff]
    %v105 = vld [vmem:[#allocation5 + $0x1f8] sm:$0xff]
    %v106 = vld [vmem:[#allocation5 + $0x200] sm:$0xff]
    %v107 = vld [vmem:[#allocation5 + $0x208] sm:$0xff]
    %v108 = vld [vmem:[#allocation5 + $0x210] sm:$0xff]
    %v109 = vld [vmem:[#allocation5 + $0x218] sm:$0xff]
    %v110 = vld [vmem:[#allocation5 + $0x220] sm:$0xff]
    %v111 = vld [vmem:[#allocation5 + $0x228] sm:$0xff]
    %v112 = vld [vmem:[#allocation5 + $0x230] sm:$0xff]
    %v113 = vld [vmem:[#allocation5 + $0x238] sm:$0xff]
    %v114 = vld [vmem:[#allocation5 + $0x240] sm:$0xff]
    %v115 = vld [vmem:[#allocation5 + $0x248] sm:$0xff]
    %v116 = vld [vmem:[#allocation5 + $0x250] sm:$0xff]
    %v117 = vld [vmem:[#allocation5 + $0x258] sm:$0xff]
    %v118 = vld [vmem:[#allocation5 + $0x260] sm:$0xff]
    %v119 = vld [vmem:[#allocation5 + $0x268] sm:$0xff]
    %v120 = vld [vmem:[#allocation5 + $0x270] sm:$0xff]
    %v121 = vld [vmem:[#allocation5 + $0x278] sm:$0xff]
    %v122 = vld [vmem:[#allocation5 + $0x280] sm:$0xff]
    %v123 = vld [vmem:[#allocation5 + $0x288] sm:$0xff]
    %v124 = vld [vmem:[#allocation5 + $0x290] sm:$0xff]
    %v125 = vld [vmem:[#allocation5 + $0x298] sm:$0xff]
    %v126 = vld [vmem:[#allocation5 + $0x2a0] sm:$0xff]
    %v127 = vld [vmem:[#allocation5 + $0x2a8] sm:$0xff]
    %v128 = vld [vmem:[#allocation5 + $0x2b0] sm:$0xff]
    %v129 = vld [vmem:[#allocation5 + $0x2b8] sm:$0xff]
    %v130 = vld [vmem:[#allocation5 + $0x2c0] sm:$0xff]
    %v131 = vld [vmem:[#allocation5 + $0x2c8] sm:$0xff]
    %v132 = vld [vmem:[#allocation5 + $0x2d0] sm:$0xff]
    %v133 = vld [vmem:[#allocation5 + $0x2d8] sm:$0xff]
    %v134 = vld [vmem:[#allocation5 + $0x2e0] sm:$0xff]
    %v135 = vld [vmem:[#allocation5 + $0x2e8] sm:$0xff]
    %v136 = vld [vmem:[#allocation5 + $0x2f0] sm:$0xff]
    %v137 = vld [vmem:[#allocation5 + $0x2f8] sm:$0xff]
    %v138 = vld [vmem:[#allocation5 + $0x300] sm:$0xff]
    %v139 = vld [vmem:[#allocation5 + $0x308] sm:$0xff]
    %v140 = vld [vmem:[#allocation5 + $0x310] sm:$0xff]
    %v141 = vld [vmem:[#allocation5 + $0x318] sm:$0xff]
    %v142 = vld [vmem:[#allocation5 + $0x320] sm:$0xff]
    %v143 = vld [vmem:[#allocation5 + $0x328] sm:$0xff]
    %v144 = vld [vmem:[#allocation5 + $0x330] sm:$0xff]
    %v145 = vld [vmem:[#allocation5 + $0x338] sm:$0xff]
    %v146 = vld [vmem:[#allocation5 + $0x340] sm:$0xff]
    %v147 = vld [vmem:[#allocation5 + $0x348] sm:$0xff]
    %v148 = vld [vmem:[#allocation5 + $0x350] sm:$0xff]
    %v149 = vld [vmem:[#allocation5 + $0x358] sm:$0xff]
    %v150 = vld [vmem:[#allocation5 + $0x360] sm:$0xff]
    %v151 = vld [vmem:[#allocation5 + $0x368] sm:$0xff]
    %v152 = vld [vmem:[#allocation5 + $0x370] sm:$0xff]
    %v153 = vld [vmem:[#allocation5 + $0x378] sm:$0xff]
    %v154 = vld [vmem:[#allocation5 + $0x380] sm:$0xff]
    %v155 = vld [vmem:[#allocation5 + $0x388] sm:$0xff]
    %v156 = vld [vmem:[#allocation5 + $0x390] sm:$0xff]
    %v157 = vld [vmem:[#allocation5 + $0x398] sm:$0xff]
    %v158 = vld [vmem:[#allocation5 + $0x3a0] sm:$0xff]
    %v159 = vld [vmem:[#allocation5 + $0x3a8] sm:$0xff]
    %v160 = vld [vmem:[#allocation5 + $0x3b0] sm:$0xff]
    %v161 = vld [vmem:[#allocation5 + $0x3b8] sm:$0xff]
    %v162 = vld [vmem:[#allocation5 + $0x3c0] sm:$0xff]
    %v163 = vld [vmem:[#allocation5 + $0x3c8] sm:$0xff]
    %v164 = vld [vmem:[#allocation5 + $0x3d0] sm:$0xff]
    %v165 = vld [vmem:[#allocation5 + $0x3d8] sm:$0xff]
    %v166 = vld [vmem:[#allocation5 + $0x3e0] sm:$0xff]
    %v167 = vld [vmem:[#allocation5 + $0x3e8] sm:$0xff]
    %v168 = vld [vmem:[#allocation5 + $0x3f0] sm:$0xff]
    %v169 = vld [vmem:[#allocation5 + $0x3f8] sm:$0xff]
    %v171 = vcombine.high %v41, %v41
    %v173 = vunpack.c.l.s4 1966171168
    %v174 = vunpack.c.0.s8 %v173
    %v175 = vlaneseq
    %v176 = vshrl.u32 %v175, 7
    %v177 = vsub.s32 %v174, %v176
    %v178 = vrot.slane %v41, %v177
    %v180 = vunpack.c.l.s4 1966171168
    %v181 = vunpack.c.0.s8 %v180
    %v182 = vlaneseq
    %v183 = vshrl.u32 %v182, 7
    %v184 = vsub.s32 %v181, %v183
    %v185 = vrot.slane %v171, %v184
    %v186 = vcombine.high %v178, %v178
    %v187 = vcombine.high %v185, %v185
    %v189 = vunpack.c.l.s4 1966171168
    %v190 = vunpack.c.0.s8 %v189
    %v191 = vlaneseq
    %v192 = vshrl.u32 %v191, 7
    %v193 = vsub.s32 %v190, %v192
    %v194 = vrot.slane %v178, %v193
    %v196 = vunpack.c.l.s4 1966171168
    %v197 = vunpack.c.0.s8 %v196
    %v198 = vlaneseq
    %v199 = vshrl.u32 %v198, 7
    %v200 = vsub.s32 %v197, %v199
    %v201 = vrot.slane %v185, %v200
    %v203 = vunpack.c.l.s4 1966171168
    %v204 = vunpack.c.0.s8 %v203
    %v205 = vlaneseq
    %v206 = vshrl.u32 %v205, 7
    %v207 = vsub.s32 %v204, %v206
    %v208 = vrot.slane %v186, %v207
    %v210 = vunpack.c.l.s4 1966171168
    %v211 = vunpack.c.0.s8 %v210
    %v212 = vlaneseq
    %v213 = vshrl.u32 %v212, 7
    %v214 = vsub.s32 %v211, %v213
    %v215 = vrot.slane %v187, %v214
    %v216 = vcombine.high %v194, %v194
    %v217 = vcombine.high %v201, %v201
    %v218 = vcombine.high %v208, %v208
    %v219 = vcombine.high %v215, %v215
    %228 = vmatprep.subr.mxu0 0.0
    %229 = vmatpush1.xpose.msra.mxu0 %v42
    %230 = vmatprep.subr.mxu0 0.0
    %231 = vmatpush1.xpose.msra.mxu0 %v43
    %232 = vmatprep.subr.mxu0 0.0
    %233 = vmatpush1.xpose.msra.mxu0 %v44
    %234 = vmatprep.subr.mxu0 0.0
    %235 = vmatpush1.xpose.msra.mxu0 %v45
    %236 = vmatprep.subr.mxu0 0.0
    %237 = vmatpush1.xpose.msra.mxu0 %v46
    %238 = vmatprep.subr.mxu0 0.0
    %239 = vmatpush1.xpose.msra.mxu0 %v47
    %240 = vmatprep.subr.mxu0 0.0
    %241 = vmatpush1.xpose.msra.mxu0 %v48
    %242 = vmatprep.subr.mxu0 0.0
    %243 = vmatpush1.xpose.msra.mxu0 %v49
    %244 = vmatprep.subr.mxu0 0.0
    %245 = vmatpush1.xpose.msra.mxu0 %v50
    %246 = vmatprep.subr.mxu0 0.0
    %247 = vmatpush1.xpose.msra.mxu0 %v51
    %248 = vmatprep.subr.mxu0 0.0
    %249 = vmatpush1.xpose.msra.mxu0 %v52
    %250 = vmatprep.subr.mxu0 0.0
    %251 = vmatpush1.xpose.msra.mxu0 %v53
    %252 = vmatprep.subr.mxu0 0.0
    %253 = vmatpush1.xpose.msra.mxu0 %v54
    %254 = vmatprep.subr.mxu0 0.0
    %255 = vmatpush1.xpose.msra.mxu0 %v55
    %256 = vmatprep.subr.mxu0 0.0
    %257 = vmatpush1.xpose.msra.mxu0 %v56
    %258 = vmatprep.subr.mxu0 0.0
    %259 = vmatpush1.xpose.msra.mxu0 %v57
    %260 = vmatprep.subr.mxu0 0.0
    %261 = vmatpush1.xpose.msra.mxu0 0.0
    %262 = vmatprep.subr.mxu0 0.0
    %263 = vmatpush1.xpose.msra.mxu0 0.0
    %264 = vmatprep.subr.mxu0 0.0
    %265 = vmatpush1.xpose.msra.mxu0 0.0
    %266 = vmatprep.subr.mxu0 0.0
    %267 = vmatpush1.xpose.msra.mxu0 0.0
    %268 = vmatprep.subr.mxu0 0.0
    %269 = vmatpush1.xpose.msra.mxu0 0.0
    %270 = vmatprep.subr.mxu0 0.0
    %271 = vmatpush1.xpose.msra.mxu0 0.0
    %272 = vmatprep.subr.mxu0 0.0
    %273 = vmatpush1.xpose.msra.mxu0 0.0
    %274 = vmatprep.subr.mxu0 0.0
    %275 = vmatpush1.xpose.msra.mxu0 0.0
    %276 = vmatprep.subr.mxu0 0.0
    %277 = vmatpush1.xpose.msra.mxu0 0.0
    %278 = vmatprep.subr.mxu0 0.0
    %279 = vmatpush1.xpose.msra.mxu0 0.0
    %280 = vmatprep.subr.mxu0 0.0
    %281 = vmatpush1.xpose.msra.mxu0 0.0
    %282 = vmatprep.subr.mxu0 0.0
    %283 = vmatpush1.xpose.msra.mxu0 0.0
    %284 = vmatprep.subr.mxu0 0.0
    %285 = vmatpush1.xpose.msra.mxu0 0.0
    %286 = vmatprep.subr.mxu0 0.0
    %287 = vmatpush1.xpose.msra.mxu0 0.0
    %288 = vmatprep.subr.mxu0 0.0
    %289 = vmatpush1.xpose.msra.mxu0 0.0
    %290 = vmatprep.subr.mxu0 0.0
    %291 = vmatpush1.xpose.msra.mxu0 0.0
    %292 = vmatprep.mubr.f32.mxu0 0.0
    %293 = vmatmul.mubr.f32.gmra.mrb[0].mxu0 %v194
    %v294 = vpop.f32.mrb[0].mxu0
    %v295 = vadd.f32 0.0, %v294
    %v296 = vpop.f32.mrb[0].mxu0
    %297 = vdwg.mxu0
    %298 = vmatprep.subr.mxu0 0.0
    %299 = vmatpush1.xpose.msra.mxu0 %v58
    %300 = vmatprep.subr.mxu0 0.0
    %301 = vmatpush1.xpose.msra.mxu0 %v59
    %302 = vmatprep.subr.mxu0 0.0
    %303 = vmatpush1.xpose.msra.mxu0 %v60
    %304 = vmatprep.subr.mxu0 0.0
    %305 = vmatpush1.xpose.msra.mxu0 %v61
    %306 = vmatprep.subr.mxu0 0.0
    %307 = vmatpush1.xpose.msra.mxu0 %v62
    %308 = vmatprep.subr.mxu0 0.0
    %309 = vmatpush1.xpose.msra.mxu0 %v63
    %310 = vmatprep.subr.mxu0 0.0
    %311 = vmatpush1.xpose.msra.mxu0 %v64
    %312 = vmatprep.subr.mxu0 0.0
    %313 = vmatpush1.xpose.msra.mxu0 %v65
    %314 = vmatprep.subr.mxu0 0.0
    %315 = vmatpush1.xpose.msra.mxu0 %v66
    %316 = vmatprep.subr.mxu0 0.0
    %317 = vmatpush1.xpose.msra.mxu0 %v67
    %318 = vmatprep.subr.mxu0 0.0
    %319 = vmatpush1.xpose.msra.mxu0 %v68
    %320 = vmatprep.subr.mxu0 0.0
    %321 = vmatpush1.xpose.msra.mxu0 %v69
    %322 = vmatprep.subr.mxu0 0.0
    %323 = vmatpush1.xpose.msra.mxu0 %v70
    %324 = vmatprep.subr.mxu0 0.0
    %325 = vmatpush1.xpose.msra.mxu0 %v71
    %326 = vmatprep.subr.mxu0 0.0
    %327 = vmatpush1.xpose.msra.mxu0 %v72
    %328 = vmatprep.subr.mxu0 0.0
    %329 = vmatpush1.xpose.msra.mxu0 %v73
    %330 = vmatprep.subr.mxu0 0.0
    %331 = vmatpush1.xpose.msra.mxu0 0.0
    %332 = vmatprep.subr.mxu0 0.0
    %333 = vmatpush1.xpose.msra.mxu0 0.0
    %334 = vmatprep.subr.mxu0 0.0
    %335 = vmatpush1.xpose.msra.mxu0 0.0
    %336 = vmatprep.subr.mxu0 0.0
    %337 = vmatpush1.xpose.msra.mxu0 0.0
    %338 = vmatprep.subr.mxu0 0.0
    %339 = vmatpush1.xpose.msra.mxu0 0.0
    %340 = vmatprep.subr.mxu0 0.0
    %341 = vmatpush1.xpose.msra.mxu0 0.0
    %342 = vmatprep.subr.mxu0 0.0
    %343 = vmatpush1.xpose.msra.mxu0 0.0
    %344 = vmatprep.subr.mxu0 0.0
    %345 = vmatpush1.xpose.msra.mxu0 0.0
    %346 = vmatprep.subr.mxu0 0.0
    %347 = vmatpush1.xpose.msra.mxu0 0.0
    %348 = vmatprep.subr.mxu0 0.0
    %349 = vmatpush1.xpose.msra.mxu0 0.0
    %350 = vmatprep.subr.mxu0 0.0
    %351 = vmatpush1.xpose.msra.mxu0 0.0
    %352 = vmatprep.subr.mxu0 0.0
    %353 = vmatpush1.xpose.msra.mxu0 0.0
    %354 = vmatprep.subr.mxu0 0.0
    %355 = vmatpush1.xpose.msra.mxu0 0.0
    %356 = vmatprep.subr.mxu0 0.0
    %357 = vmatpush1.xpose.msra.mxu0 0.0
    %358 = vmatprep.subr.mxu0 0.0
    %359 = vmatpush1.xpose.msra.mxu0 0.0
    %360 = vmatprep.subr.mxu0 0.0
    %361 = vmatpush1.xpose.msra.mxu0 0.0
    %362 = vmatprep.mubr.f32.mxu0 0.0
    %363 = vmatmul.mubr.f32.gmra.mrb[0].mxu0 %v208
    %v364 = vpop.f32.mrb[0].mxu0
    %v365 = vadd.f32 0.0, %v364
    %v366 = vpop.f32.mrb[0].mxu0
    %367 = vdwg.mxu0
    %368 = vmatprep.subr.mxu0 0.0
    %369 = vmatpush1.xpose.msra.mxu0 %v74
    %370 = vmatprep.subr.mxu0 0.0
    %371 = vmatpush1.xpose.msra.mxu0 %v75
    %372 = vmatprep.subr.mxu0 0.0
    %373 = vmatpush1.xpose.msra.mxu0 %v76
    %374 = vmatprep.subr.mxu0 0.0
    %375 = vmatpush1.xpose.msra.mxu0 %v77
    %376 = vmatprep.subr.mxu0 0.0
    %377 = vmatpush1.xpose.msra.mxu0 %v78
    %378 = vmatprep.subr.mxu0 0.0
    %379 = vmatpush1.xpose.msra.mxu0 %v79
    %380 = vmatprep.subr.mxu0 0.0
    %381 = vmatpush1.xpose.msra.mxu0 %v80
    %382 = vmatprep.subr.mxu0 0.0
    %383 = vmatpush1.xpose.msra.mxu0 %v81
    %384 = vmatprep.subr.mxu0 0.0
    %385 = vmatpush1.xpose.msra.mxu0 %v82
    %386 = vmatprep.subr.mxu0 0.0
    %387 = vmatpush1.xpose.msra.mxu0 %v83
    %388 = vmatprep.subr.mxu0 0.0
    %389 = vmatpush1.xpose.msra.mxu0 %v84
    %390 = vmatprep.subr.mxu0 0.0
    %391 = vmatpush1.xpose.msra.mxu0 %v85
    %392 = vmatprep.subr.mxu0 0.0
    %393 = vmatpush1.xpose.msra.mxu0 %v86
    %394 = vmatprep.subr.mxu0 0.0
    %395 = vmatpush1.xpose.msra.mxu0 %v87
    %396 = vmatprep.subr.mxu0 0.0
    %397 = vmatpush1.xpose.msra.mxu0 %v88
    %398 = vmatprep.subr.mxu0 0.0
    %399 = vmatpush1.xpose.msra.mxu0 %v89
    %400 = vmatprep.subr.mxu0 0.0
    %401 = vmatpush1.xpose.msra.mxu0 0.0
    %402 = vmatprep.subr.mxu0 0.0
    %403 = vmatpush1.xpose.msra.mxu0 0.0
    %404 = vmatprep.subr.mxu0 0.0
    %405 = vmatpush1.xpose.msra.mxu0 0.0
    %406 = vmatprep.subr.mxu0 0.0
    %407 = vmatpush1.xpose.msra.mxu0 0.0
    %408 = vmatprep.subr.mxu0 0.0
    %409 = vmatpush1.xpose.msra.mxu0 0.0
    %410 = vmatprep.subr.mxu0 0.0
    %411 = vmatpush1.xpose.msra.mxu0 0.0
    %412 = vmatprep.subr.mxu0 0.0
    %413 = vmatpush1.xpose.msra.mxu0 0.0
    %414 = vmatprep.subr.mxu0 0.0
    %415 = vmatpush1.xpose.msra.mxu0 0.0
    %416 = vmatprep.subr.mxu0 0.0
    %417 = vmatpush1.xpose.msra.mxu0 0.0
    %418 = vmatprep.subr.mxu0 0.0
    %419 = vmatpush1.xpose.msra.mxu0 0.0
    %420 = vmatprep.subr.mxu0 0.0
    %421 = vmatpush1.xpose.msra.mxu0 0.0
    %422 = vmatprep.subr.mxu0 0.0
    %423 = vmatpush1.xpose.msra.mxu0 0.0
    %424 = vmatprep.subr.mxu0 0.0
    %425 = vmatpush1.xpose.msra.mxu0 0.0
    %426 = vmatprep.subr.mxu0 0.0
    %427 = vmatpush1.xpose.msra.mxu0 0.0
    %428 = vmatprep.subr.mxu0 0.0
    %429 = vmatpush1.xpose.msra.mxu0 0.0
    %430 = vmatprep.subr.mxu0 0.0
    %431 = vmatpush1.xpose.msra.mxu0 0.0
    %432 = vmatprep.mubr.f32.mxu0 0.0
    %433 = vmatmul.mubr.f32.gmra.mrb[0].mxu0 %v216
    %v434 = vpop.f32.mrb[0].mxu0
    %v435 = vadd.f32 0.0, %v434
    %v436 = vpop.f32.mrb[0].mxu0
    %437 = vdwg.mxu0
    %438 = vmatprep.subr.mxu0 0.0
    %439 = vmatpush1.xpose.msra.mxu0 %v90
    %440 = vmatprep.subr.mxu0 0.0
    %441 = vmatpush1.xpose.msra.mxu0 %v91
    %442 = vmatprep.subr.mxu0 0.0
    %443 = vmatpush1.xpose.msra.mxu0 %v92
    %444 = vmatprep.subr.mxu0 0.0
    %445 = vmatpush1.xpose.msra.mxu0 %v93
    %446 = vmatprep.subr.mxu0 0.0
    %447 = vmatpush1.xpose.msra.mxu0 %v94
    %448 = vmatprep.subr.mxu0 0.0
    %449 = vmatpush1.xpose.msra.mxu0 %v95
    %450 = vmatprep.subr.mxu0 0.0
    %451 = vmatpush1.xpose.msra.mxu0 %v96
    %452 = vmatprep.subr.mxu0 0.0
    %453 = vmatpush1.xpose.msra.mxu0 %v97
    %454 = vmatprep.subr.mxu0 0.0
    %455 = vmatpush1.xpose.msra.mxu0 %v98
    %456 = vmatprep.subr.mxu0 0.0
    %457 = vmatpush1.xpose.msra.mxu0 %v99
    %458 = vmatprep.subr.mxu0 0.0
    %459 = vmatpush1.xpose.msra.mxu0 %v100
    %460 = vmatprep.subr.mxu0 0.0
    %461 = vmatpush1.xpose.msra.mxu0 %v101
    %462 = vmatprep.subr.mxu0 0.0
    %463 = vmatpush1.xpose.msra.mxu0 %v102
    %464 = vmatprep.subr.mxu0 0.0
    %465 = vmatpush1.xpose.msra.mxu0 %v103
    %466 = vmatprep.subr.mxu0 0.0
    %467 = vmatpush1.xpose.msra.mxu0 %v104
    %468 = vmatprep.subr.mxu0 0.0
    %469 = vmatpush1.xpose.msra.mxu0 %v105
    %470 = vmatprep.subr.mxu0 0.0
    %471 = vmatpush1.xpose.msra.mxu0 0.0
    %472 = vmatprep.subr.mxu0 0.0
    %473 = vmatpush1.xpose.msra.mxu0 0.0
    %474 = vmatprep.subr.mxu0 0.0
    %475 = vmatpush1.xpose.msra.mxu0 0.0
    %476 = vmatprep.subr.mxu0 0.0
    %477 = vmatpush1.xpose.msra.mxu0 0.0
    %478 = vmatprep.subr.mxu0 0.0
    %479 = vmatpush1.xpose.msra.mxu0 0.0
    %480 = vmatprep.subr.mxu0 0.0
    %481 = vmatpush1.xpose.msra.mxu0 0.0
    %482 = vmatprep.subr.mxu0 0.0
    %483 = vmatpush1.xpose.msra.mxu0 0.0
    %484 = vmatprep.subr.mxu0 0.0
    %485 = vmatpush1.xpose.msra.mxu0 0.0
    %486 = vmatprep.subr.mxu0 0.0
    %487 = vmatpush1.xpose.msra.mxu0 0.0
    %488 = vmatprep.subr.mxu0 0.0
    %489 = vmatpush1.xpose.msra.mxu0 0.0
    %490 = vmatprep.subr.mxu0 0.0
    %491 = vmatpush1.xpose.msra.mxu0 0.0
    %492 = vmatprep.subr.mxu0 0.0
    %493 = vmatpush1.xpose.msra.mxu0 0.0
    %494 = vmatprep.subr.mxu0 0.0
    %495 = vmatpush1.xpose.msra.mxu0 0.0
    %496 = vmatprep.subr.mxu0 0.0
    %497 = vmatpush1.xpose.msra.mxu0 0.0
    %498 = vmatprep.subr.mxu0 0.0
    %499 = vmatpush1.xpose.msra.mxu0 0.0
    %500 = vmatprep.subr.mxu0 0.0
    %501 = vmatpush1.xpose.msra.mxu0 0.0
    %502 = vmatprep.mubr.f32.mxu0 0.0
    %503 = vmatmul.mubr.f32.gmra.mrb[0].mxu0 %v218
    %v504 = vpop.f32.mrb[0].mxu0
    %v505 = vadd.f32 0.0, %v504
    %v506 = vpop.f32.mrb[0].mxu0
    %507 = vdwg.mxu0
    %508 = vmatprep.subr.mxu0 0.0
    %509 = vmatpush1.xpose.msra.mxu0 %v106
    %510 = vmatprep.subr.mxu0 0.0
    %511 = vmatpush1.xpose.msra.mxu0 %v107
    %512 = vmatprep.subr.mxu0 0.0
    %513 = vmatpush1.xpose.msra.mxu0 %v108
    %514 = vmatprep.subr.mxu0 0.0
    %515 = vmatpush1.xpose.msra.mxu0 %v109
    %516 = vmatprep.subr.mxu0 0.0
    %517 = vmatpush1.xpose.msra.mxu0 %v110
    %518 = vmatprep.subr.mxu0 0.0
    %519 = vmatpush1.xpose.msra.mxu0 %v111
    %520 = vmatprep.subr.mxu0 0.0
    %521 = vmatpush1.xpose.msra.mxu0 %v112
    %522 = vmatprep.subr.mxu0 0.0
    %523 = vmatpush1.xpose.msra.mxu0 %v113
    %524 = vmatprep.subr.mxu0 0.0
    %525 = vmatpush1.xpose.msra.mxu0 %v114
    %526 = vmatprep.subr.mxu0 0.0
    %527 = vmatpush1.xpose.msra.mxu0 %v115
    %528 = vmatprep.subr.mxu0 0.0
    %529 = vmatpush1.xpose.msra.mxu0 %v116
    %530 = vmatprep.subr.mxu0 0.0
    %531 = vmatpush1.xpose.msra.mxu0 %v117
    %532 = vmatprep.subr.mxu0 0.0
    %533 = vmatpush1.xpose.msra.mxu0 %v118
    %534 = vmatprep.subr.mxu0 0.0
    %535 = vmatpush1.xpose.msra.mxu0 %v119
    %536 = vmatprep.subr.mxu0 0.0
    %537 = vmatpush1.xpose.msra.mxu0 %v120
    %538 = vmatprep.subr.mxu0 0.0
    %539 = vmatpush1.xpose.msra.mxu0 %v121
    %540 = vmatprep.subr.mxu0 0.0
    %541 = vmatpush1.xpose.msra.mxu0 0.0
    %542 = vmatprep.subr.mxu0 0.0
    %543 = vmatpush1.xpose.msra.mxu0 0.0
    %544 = vmatprep.subr.mxu0 0.0
    %545 = vmatpush1.xpose.msra.mxu0 0.0
    %546 = vmatprep.subr.mxu0 0.0
    %547 = vmatpush1.xpose.msra.mxu0 0.0
    %548 = vmatprep.subr.mxu0 0.0
    %549 = vmatpush1.xpose.msra.mxu0 0.0
    %550 = vmatprep.subr.mxu0 0.0
    %551 = vmatpush1.xpose.msra.mxu0 0.0
    %552 = vmatprep.subr.mxu0 0.0
    %553 = vmatpush1.xpose.msra.mxu0 0.0
    %554 = vmatprep.subr.mxu0 0.0
    %555 = vmatpush1.xpose.msra.mxu0 0.0
    %556 = vmatprep.subr.mxu0 0.0
    %557 = vmatpush1.xpose.msra.mxu0 0.0
    %558 = vmatprep.subr.mxu0 0.0
    %559 = vmatpush1.xpose.msra.mxu0 0.0
    %560 = vmatprep.subr.mxu0 0.0
    %561 = vmatpush1.xpose.msra.mxu0 0.0
    %562 = vmatprep.subr.mxu0 0.0
    %563 = vmatpush1.xpose.msra.mxu0 0.0
    %564 = vmatprep.subr.mxu0 0.0
    %565 = vmatpush1.xpose.msra.mxu0 0.0
    %566 = vmatprep.subr.mxu0 0.0
    %567 = vmatpush1.xpose.msra.mxu0 0.0
    %568 = vmatprep.subr.mxu0 0.0
    %569 = vmatpush1.xpose.msra.mxu0 0.0
    %570 = vmatprep.subr.mxu0 0.0
    %571 = vmatpush1.xpose.msra.mxu0 0.0
    %572 = vmatprep.mubr.f32.mxu0 0.0
    %573 = vmatmul.mubr.f32.gmra.mrb[0].mxu0 %v201
    %v574 = vpop.f32.mrb[0].mxu0
    %v575 = vadd.f32 0.0, %v574
    %v576 = vpop.f32.mrb[0].mxu0
    %577 = vdwg.mxu0
    %578 = vmatprep.subr.mxu0 0.0
    %579 = vmatpush1.xpose.msra.mxu0 %v122
    %580 = vmatprep.subr.mxu0 0.0
    %581 = vmatpush1.xpose.msra.mxu0 %v123
    %582 = vmatprep.subr.mxu0 0.0
    %583 = vmatpush1.xpose.msra.mxu0 %v124
    %584 = vmatprep.subr.mxu0 0.0
    %585 = vmatpush1.xpose.msra.mxu0 %v125
    %586 = vmatprep.subr.mxu0 0.0
    %587 = vmatpush1.xpose.msra.mxu0 %v126
    %588 = vmatprep.subr.mxu0 0.0
    %589 = vmatpush1.xpose.msra.mxu0 %v127
    %590 = vmatprep.subr.mxu0 0.0
    %591 = vmatpush1.xpose.msra.mxu0 %v128
    %592 = vmatprep.subr.mxu0 0.0
    %593 = vmatpush1.xpose.msra.mxu0 %v129
    %594 = vmatprep.subr.mxu0 0.0
    %595 = vmatpush1.xpose.msra.mxu0 %v130
    %596 = vmatprep.subr.mxu0 0.0
    %597 = vmatpush1.xpose.msra.mxu0 %v131
    %598 = vmatprep.subr.mxu0 0.0
    %599 = vmatpush1.xpose.msra.mxu0 %v132
    %600 = vmatprep.subr.mxu0 0.0
    %601 = vmatpush1.xpose.msra.mxu0 %v133
    %602 = vmatprep.subr.mxu0 0.0
    %603 = vmatpush1.xpose.msra.mxu0 %v134
    %604 = vmatprep.subr.mxu0 0.0
    %605 = vmatpush1.xpose.msra.mxu0 %v135
    %606 = vmatprep.subr.mxu0 0.0
    %607 = vmatpush1.xpose.msra.mxu0 %v136
    %608 = vmatprep.subr.mxu0 0.0
    %609 = vmatpush1.xpose.msra.mxu0 %v137
    %610 = vmatprep.subr.mxu0 0.0
    %611 = vmatpush1.xpose.msra.mxu0 0.0
    %612 = vmatprep.subr.mxu0 0.0
    %613 = vmatpush1.xpose.msra.mxu0 0.0
    %614 = vmatprep.subr.mxu0 0.0
    %615 = vmatpush1.xpose.msra.mxu0 0.0
    %616 = vmatprep.subr.mxu0 0.0
    %617 = vmatpush1.xpose.msra.mxu0 0.0
    %618 = vmatprep.subr.mxu0 0.0
    %619 = vmatpush1.xpose.msra.mxu0 0.0
    %620 = vmatprep.subr.mxu0 0.0
    %621 = vmatpush1.xpose.msra.mxu0 0.0
    %622 = vmatprep.subr.mxu0 0.0
    %623 = vmatpush1.xpose.msra.mxu0 0.0
    %624 = vmatprep.subr.mxu0 0.0
    %625 = vmatpush1.xpose.msra.mxu0 0.0
    %626 = vmatprep.subr.mxu0 0.0
    %627 = vmatpush1.xpose.msra.mxu0 0.0
    %628 = vmatprep.subr.mxu0 0.0
    %629 = vmatpush1.xpose.msra.mxu0 0.0
    %630 = vmatprep.subr.mxu0 0.0
    %631 = vmatpush1.xpose.msra.mxu0 0.0
    %632 = vmatprep.subr.mxu0 0.0
    %633 = vmatpush1.xpose.msra.mxu0 0.0
    %634 = vmatprep.subr.mxu0 0.0
    %635 = vmatpush1.xpose.msra.mxu0 0.0
    %636 = vmatprep.subr.mxu0 0.0
    %637 = vmatpush1.xpose.msra.mxu0 0.0
    %638 = vmatprep.subr.mxu0 0.0
    %639 = vmatpush1.xpose.msra.mxu0 0.0
    %640 = vmatprep.subr.mxu0 0.0
    %641 = vmatpush1.xpose.msra.mxu0 0.0
    %642 = vmatprep.mubr.f32.mxu0 0.0
    %643 = vmatmul.mubr.f32.gmra.mrb[0].mxu0 %v215
    %v644 = vpop.f32.mrb[0].mxu0
    %v645 = vadd.f32 0.0, %v644
    %v646 = vpop.f32.mrb[0].mxu0
    %647 = vdwg.mxu0
    %648 = vmatprep.subr.mxu0 0.0
    %649 = vmatpush1.xpose.msra.mxu0 %v138
    %650 = vmatprep.subr.mxu0 0.0
    %651 = vmatpush1.xpose.msra.mxu0 %v139
    %652 = vmatprep.subr.mxu0 0.0
    %653 = vmatpush1.xpose.msra.mxu0 %v140
    %654 = vmatprep.subr.mxu0 0.0
    %655 = vmatpush1.xpose.msra.mxu0 %v141
    %656 = vmatprep.subr.mxu0 0.0
    %657 = vmatpush1.xpose.msra.mxu0 %v142
    %658 = vmatprep.subr.mxu0 0.0
    %659 = vmatpush1.xpose.msra.mxu0 %v143
    %660 = vmatprep.subr.mxu0 0.0
    %661 = vmatpush1.xpose.msra.mxu0 %v144
    %662 = vmatprep.subr.mxu0 0.0
    %663 = vmatpush1.xpose.msra.mxu0 %v145
    %664 = vmatprep.subr.mxu0 0.0
    %665 = vmatpush1.xpose.msra.mxu0 %v146
    %666 = vmatprep.subr.mxu0 0.0
    %667 = vmatpush1.xpose.msra.mxu0 %v147
    %668 = vmatprep.subr.mxu0 0.0
    %669 = vmatpush1.xpose.msra.mxu0 %v148
    %670 = vmatprep.subr.mxu0 0.0
    %671 = vmatpush1.xpose.msra.mxu0 %v149
    %672 = vmatprep.subr.mxu0 0.0
    %673 = vmatpush1.xpose.msra.mxu0 %v150
    %674 = vmatprep.subr.mxu0 0.0
    %675 = vmatpush1.xpose.msra.mxu0 %v151
    %676 = vmatprep.subr.mxu0 0.0
    %677 = vmatpush1.xpose.msra.mxu0 %v152
    %678 = vmatprep.subr.mxu0 0.0
    %679 = vmatpush1.xpose.msra.mxu0 %v153
    %680 = vmatprep.subr.mxu0 0.0
    %681 = vmatpush1.xpose.msra.mxu0 0.0
    %682 = vmatprep.subr.mxu0 0.0
    %683 = vmatpush1.xpose.msra.mxu0 0.0
    %684 = vmatprep.subr.mxu0 0.0
    %685 = vmatpush1.xpose.msra.mxu0 0.0
    %686 = vmatprep.subr.mxu0 0.0
    %687 = vmatpush1.xpose.msra.mxu0 0.0
    %688 = vmatprep.subr.mxu0 0.0
    %689 = vmatpush1.xpose.msra.mxu0 0.0
    %690 = vmatprep.subr.mxu0 0.0
    %691 = vmatpush1.xpose.msra.mxu0 0.0
    %692 = vmatprep.subr.mxu0 0.0
    %693 = vmatpush1.xpose.msra.mxu0 0.0
    %694 = vmatprep.subr.mxu0 0.0
    %695 = vmatpush1.xpose.msra.mxu0 0.0
    %696 = vmatprep.subr.mxu0 0.0
    %697 = vmatpush1.xpose.msra.mxu0 0.0
    %698 = vmatprep.subr.mxu0 0.0
    %699 = vmatpush1.xpose.msra.mxu0 0.0
    %700 = vmatprep.subr.mxu0 0.0
    %701 = vmatpush1.xpose.msra.mxu0 0.0
    %702 = vmatprep.subr.mxu0 0.0
    %703 = vmatpush1.xpose.msra.mxu0 0.0
    %704 = vmatprep.subr.mxu0 0.0
    %705 = vmatpush1.xpose.msra.mxu0 0.0
    %706 = vmatprep.subr.mxu0 0.0
    %707 = vmatpush1.xpose.msra.mxu0 0.0
    %708 = vmatprep.subr.mxu0 0.0
    %709 = vmatpush1.xpose.msra.mxu0 0.0
    %710 = vmatprep.subr.mxu0 0.0
    %711 = vmatpush1.xpose.msra.mxu0 0.0
    %712 = vmatprep.mubr.f32.mxu0 0.0
    %713 = vmatmul.mubr.f32.gmra.mrb[0].mxu0 %v217
    %v714 = vpop.f32.mrb[0].mxu0
    %v715 = vadd.f32 0.0, %v714
    %v716 = vpop.f32.mrb[0].mxu0
    %717 = vdwg.mxu0
    %718 = vmatprep.subr.mxu0 0.0
    %719 = vmatpush1.xpose.msra.mxu0 %v154
    %720 = vmatprep.subr.mxu0 0.0
    %721 = vmatpush1.xpose.msra.mxu0 %v155
    %722 = vmatprep.subr.mxu0 0.0
    %723 = vmatpush1.xpose.msra.mxu0 %v156
    %724 = vmatprep.subr.mxu0 0.0
    %725 = vmatpush1.xpose.msra.mxu0 %v157
    %726 = vmatprep.subr.mxu0 0.0
    %727 = vmatpush1.xpose.msra.mxu0 %v158
    %728 = vmatprep.subr.mxu0 0.0
    %729 = vmatpush1.xpose.msra.mxu0 %v159
    %730 = vmatprep.subr.mxu0 0.0
    %731 = vmatpush1.xpose.msra.mxu0 %v160
    %732 = vmatprep.subr.mxu0 0.0
    %733 = vmatpush1.xpose.msra.mxu0 %v161
    %734 = vmatprep.subr.mxu0 0.0
    %735 = vmatpush1.xpose.msra.mxu0 %v162
    %736 = vmatprep.subr.mxu0 0.0
    %737 = vmatpush1.xpose.msra.mxu0 %v163
    %738 = vmatprep.subr.mxu0 0.0
    %739 = vmatpush1.xpose.msra.mxu0 %v164
    %740 = vmatprep.subr.mxu0 0.0
    %741 = vmatpush1.xpose.msra.mxu0 %v165
    %742 = vmatprep.subr.mxu0 0.0
    %743 = vmatpush1.xpose.msra.mxu0 %v166
    %744 = vmatprep.subr.mxu0 0.0
    %745 = vmatpush1.xpose.msra.mxu0 %v167
    %746 = vmatprep.subr.mxu0 0.0
    %747 = vmatpush1.xpose.msra.mxu0 %v168
    %748 = vmatprep.subr.mxu0 0.0
    %749 = vmatpush1.xpose.msra.mxu0 %v169
    %750 = vmatprep.subr.mxu0 0.0
    %751 = vmatpush1.xpose.msra.mxu0 0.0
    %752 = vmatprep.subr.mxu0 0.0
    %753 = vmatpush1.xpose.msra.mxu0 0.0
    %754 = vmatprep.subr.mxu0 0.0
    %755 = vmatpush1.xpose.msra.mxu0 0.0
    %756 = vmatprep.subr.mxu0 0.0
    %757 = vmatpush1.xpose.msra.mxu0 0.0
    %758 = vmatprep.subr.mxu0 0.0
    %759 = vmatpush1.xpose.msra.mxu0 0.0
    %760 = vmatprep.subr.mxu0 0.0
    %761 = vmatpush1.xpose.msra.mxu0 0.0
    %762 = vmatprep.subr.mxu0 0.0
    %763 = vmatpush1.xpose.msra.mxu0 0.0
    %764 = vmatprep.subr.mxu0 0.0
    %765 = vmatpush1.xpose.msra.mxu0 0.0
    %766 = vmatprep.subr.mxu0 0.0
    %767 = vmatpush1.xpose.msra.mxu0 0.0
    %768 = vmatprep.subr.mxu0 0.0
    %769 = vmatpush1.xpose.msra.mxu0 0.0
    %770 = vmatprep.subr.mxu0 0.0
    %771 = vmatpush1.xpose.msra.mxu0 0.0
    %772 = vmatprep.subr.mxu0 0.0
    %773 = vmatpush1.xpose.msra.mxu0 0.0
    %774 = vmatprep.subr.mxu0 0.0
    %775 = vmatpush1.xpose.msra.mxu0 0.0
    %776 = vmatprep.subr.mxu0 0.0
    %777 = vmatpush1.xpose.msra.mxu0 0.0
    %778 = vmatprep.subr.mxu0 0.0
    %779 = vmatpush1.xpose.msra.mxu0 0.0
    %780 = vmatprep.subr.mxu0 0.0
    %781 = vmatpush1.xpose.msra.mxu0 0.0
    %782 = vmatprep.mubr.f32.mxu0 0.0
    %783 = vmatmul.mubr.f32.gmra.mrb[0].mxu0 %v219
    %v784 = vpop.f32.mrb[0].mxu0
    %v785 = vadd.f32 0.0, %v784
    %v786 = vpop.f32.mrb[0].mxu0
    %787 = vdwg.mxu0
    %v788 = vlaneseq
    %v789 = vand.u32 %v788, 127
    %vm790 = vcmp.lt.s32.totalorder %v789, 8
    %v799 = vrot.slane %v365, 7
    %vm800 = vcmask 1041409
    %v801 = vsel %vm800, %v799, %v295
    %v802 = vrot.slane %v435, 6
    %vm803 = vcmask 1042434
    %v804 = vsel %vm803, %v802, %v801
    %v805 = vrot.slane %v505, 5
    %vm806 = vcmask 1043459
    %v807 = vsel %vm806, %v805, %v804
    %v808 = vrot.slane %v575, 4
    %vm809 = vcmask 1044484
    %v810 = vsel %vm809, %v808, %v807
    %v811 = vrot.slane %v645, 3
    %vm812 = vcmask 1045509
    %v813 = vsel %vm812, %v811, %v810
    %v814 = vrot.slane %v715, 2
    %vm815 = vcmask 1046534
    %v816 = vsel %vm815, %v814, %v813
    %v817 = vrot.slane %v785, 1
    %vm818 = vcmask 1047559
    %v819 = vsel %vm818, %v817, %v816
    %v821 = vsel %vm790, %v819, -3.4028235e+38
    %822 = vmax.xlane.f32.xlu0 %v821
    %v823 = vpop.xlane.xlu0 %822
    %v824 = vsub.f32 %v821, %v823
    %v825 = vmul.f32 %v824, 1.442695
    %v826 = vpow.pop %v825
    %827 = vadd.xlane.f32.xlu0 %v826
    %v828 = vpop.xlane.xlu0 %827
    %v829 = vrcp.pop %v828
    %v830 = vmul.f32 %v826, %v829
    %v832 = vcombine.high %v830, %v830
    %v834 = vunpack.c.l.s4 1966171168
    %v835 = vunpack.c.0.s8 %v834
    %v836 = vlaneseq
    %v837 = vshrl.u32 %v836, 7
    %v838 = vsub.s32 %v835, %v837
    %v839 = vrot.slane %v830, %v838
    %v841 = vunpack.c.l.s4 1966171168
    %v842 = vunpack.c.0.s8 %v841
    %v843 = vlaneseq
    %v844 = vshrl.u32 %v843, 7
    %v845 = vsub.s32 %v842, %v844
    %v846 = vrot.slane %v832, %v845
    %v847 = vcombine.high %v839, %v839
    %v848 = vcombine.high %v846, %v846
    %v850 = vunpack.c.l.s4 1966171168
    %v851 = vunpack.c.0.s8 %v850
    %v852 = vlaneseq
    %v853 = vshrl.u32 %v852, 7
    %v854 = vsub.s32 %v851, %v853
    %v855 = vrot.slane %v839, %v854
    %v857 = vunpack.c.l.s4 1966171168
    %v858 = vunpack.c.0.s8 %v857
    %v859 = vlaneseq
    %v860 = vshrl.u32 %v859, 7
    %v861 = vsub.s32 %v858, %v860
    %v862 = vrot.slane %v846, %v861
    %v864 = vunpack.c.l.s4 1966171168
    %v865 = vunpack.c.0.s8 %v864
    %v866 = vlaneseq
    %v867 = vshrl.u32 %v866, 7
    %v868 = vsub.s32 %v865, %v867
    %v869 = vrot.slane %v847, %v868
    %v871 = vunpack.c.l.s4 1966171168
    %v872 = vunpack.c.0.s8 %v871
    %v873 = vlaneseq
    %v874 = vshrl.u32 %v873, 7
    %v875 = vsub.s32 %v872, %v874
    %v876 = vrot.slane %v848, %v875
    %v877 = vcombine.high %v855, %v855
    %v878 = vcombine.high %v862, %v862
    %v879 = vcombine.high %v869, %v869
    %v880 = vcombine.high %v876, %v876
    %889 = vmatprep.subr.mxu0 0.0
    %890 = vmatpush1.msra.mxu0 %v42
    %891 = vmatprep.subr.mxu0 0.0
    %892 = vmatpush1.msra.mxu0 %v43
    %893 = vmatprep.subr.mxu0 0.0
    %894 = vmatpush1.msra.mxu0 %v44
    %895 = vmatprep.subr.mxu0 0.0
    %896 = vmatpush1.msra.mxu0 %v45
    %897 = vmatprep.subr.mxu0 0.0
    %898 = vmatpush1.msra.mxu0 %v46
    %899 = vmatprep.subr.mxu0 0.0
    %900 = vmatpush1.msra.mxu0 %v47
    %901 = vmatprep.subr.mxu0 0.0
    %902 = vmatpush1.msra.mxu0 %v48
    %903 = vmatprep.subr.mxu0 0.0
    %904 = vmatpush1.msra.mxu0 %v49
    %905 = vmatprep.subr.mxu0 0.0
    %906 = vmatpush1.msra.mxu0 %v50
    %907 = vmatprep.subr.mxu0 0.0
    %908 = vmatpush1.msra.mxu0 %v51
    %909 = vmatprep.subr.mxu0 0.0
    %910 = vmatpush1.msra.mxu0 %v52
    %911 = vmatprep.subr.mxu0 0.0
    %912 = vmatpush1.msra.mxu0 %v53
    %913 = vmatprep.subr.mxu0 0.0
    %914 = vmatpush1.msra.mxu0 %v54
    %915 = vmatprep.subr.mxu0 0.0
    %916 = vmatpush1.msra.mxu0 %v55
    %917 = vmatprep.subr.mxu0 0.0
    %918 = vmatpush1.msra.mxu0 %v56
    %919 = vmatprep.subr.mxu0 0.0
    %920 = vmatpush1.msra.mxu0 %v57
    %921 = vmatprep.subr.mxu0 0.0
    %922 = vmatpush1.msra.mxu0 0.0
    %923 = vmatprep.subr.mxu0 0.0
    %924 = vmatpush1.msra.mxu0 0.0
    %925 = vmatprep.subr.mxu0 0.0
    %926 = vmatpush1.msra.mxu0 0.0
    %927 = vmatprep.subr.mxu0 0.0
    %928 = vmatpush1.msra.mxu0 0.0
    %929 = vmatprep.subr.mxu0 0.0
    %930 = vmatpush1.msra.mxu0 0.0
    %931 = vmatprep.subr.mxu0 0.0
    %932 = vmatpush1.msra.mxu0 0.0
    %933 = vmatprep.subr.mxu0 0.0
    %934 = vmatpush1.msra.mxu0 0.0
    %935 = vmatprep.subr.mxu0 0.0
    %936 = vmatpush1.msra.mxu0 0.0
    %937 = vmatprep.subr.mxu0 0.0
    %938 = vmatpush1.msra.mxu0 0.0
    %939 = vmatprep.subr.mxu0 0.0
    %940 = vmatpush1.msra.mxu0 0.0
    %941 = vmatprep.subr.mxu0 0.0
    %942 = vmatpush1.msra.mxu0 0.0
    %943 = vmatprep.subr.mxu0 0.0
    %944 = vmatpush1.msra.mxu0 0.0
    %945 = vmatprep.subr.mxu0 0.0
    %946 = vmatpush1.msra.mxu0 0.0
    %947 = vmatprep.subr.mxu0 0.0
    %948 = vmatpush1.msra.mxu0 0.0
    %949 = vmatprep.subr.mxu0 0.0
    %950 = vmatpush1.msra.mxu0 0.0
    %951 = vmatprep.subr.mxu0 0.0
    %952 = vmatpush1.msra.mxu0 0.0
    %953 = vmatprep.mubr.f32.mxu0 0.0
    %954 = vmatmul.mubr.f32.gmra.mrb[0].mxu0 %v855
    %v955 = vpop.f32.mrb[0].mxu0
    %v956 = vadd.f32 0.0, %v955
    %v957 = vpop.f32.mrb[0].mxu0
    %958 = vdwg.mxu0
    %959 = vmatprep.subr.mxu0 0.0
    %960 = vmatpush1.msra.mxu0 %v58
    %961 = vmatprep.subr.mxu0 0.0
    %962 = vmatpush1.msra.mxu0 %v59
    %963 = vmatprep.subr.mxu0 0.0
    %964 = vmatpush1.msra.mxu0 %v60
    %965 = vmatprep.subr.mxu0 0.0
    %966 = vmatpush1.msra.mxu0 %v61
    %967 = vmatprep.subr.mxu0 0.0
    %968 = vmatpush1.msra.mxu0 %v62
    %969 = vmatprep.subr.mxu0 0.0
    %970 = vmatpush1.msra.mxu0 %v63
    %971 = vmatprep.subr.mxu0 0.0
    %972 = vmatpush1.msra.mxu0 %v64
    %973 = vmatprep.subr.mxu0 0.0
    %974 = vmatpush1.msra.mxu0 %v65
    %975 = vmatprep.subr.mxu0 0.0
    %976 = vmatpush1.msra.mxu0 %v66
    %977 = vmatprep.subr.mxu0 0.0
    %978 = vmatpush1.msra.mxu0 %v67
    %979 = vmatprep.subr.mxu0 0.0
    %980 = vmatpush1.msra.mxu0 %v68
    %981 = vmatprep.subr.mxu0 0.0
    %982 = vmatpush1.msra.mxu0 %v69
    %983 = vmatprep.subr.mxu0 0.0
    %984 = vmatpush1.msra.mxu0 %v70
    %985 = vmatprep.subr.mxu0 0.0
    %986 = vmatpush1.msra.mxu0 %v71
    %987 = vmatprep.subr.mxu0 0.0
    %988 = vmatpush1.msra.mxu0 %v72
    %989 = vmatprep.subr.mxu0 0.0
    %990 = vmatpush1.msra.mxu0 %v73
    %991 = vmatprep.subr.mxu0 0.0
    %992 = vmatpush1.msra.mxu0 0.0
    %993 = vmatprep.subr.mxu0 0.0
    %994 = vmatpush1.msra.mxu0 0.0
    %995 = vmatprep.subr.mxu0 0.0
    %996 = vmatpush1.msra.mxu0 0.0
    %997 = vmatprep.subr.mxu0 0.0
    %998 = vmatpush1.msra.mxu0 0.0
    %999 = vmatprep.subr.mxu0 0.0
    %1000 = vmatpush1.msra.mxu0 0.0
    %1001 = vmatprep.subr.mxu0 0.0
    %1002 = vmatpush1.msra.mxu0 0.0
    %1003 = vmatprep.subr.mxu0 0.0
    %1004 = vmatpush1.msra.mxu0 0.0
    %1005 = vmatprep.subr.mxu0 0.0
    %1006 = vmatpush1.msra.mxu0 0.0
    %1007 = vmatprep.subr.mxu0 0.0
    %1008 = vmatpush1.msra.mxu0 0.0
    %1009 = vmatprep.subr.mxu0 0.0
    %1010 = vmatpush1.msra.mxu0 0.0
    %1011 = vmatprep.subr.mxu0 0.0
    %1012 = vmatpush1.msra.mxu0 0.0
    %1013 = vmatprep.subr.mxu0 0.0
    %1014 = vmatpush1.msra.mxu0 0.0
    %1015 = vmatprep.subr.mxu0 0.0
    %1016 = vmatpush1.msra.mxu0 0.0
    %1017 = vmatprep.subr.mxu0 0.0
    %1018 = vmatpush1.msra.mxu0 0.0
    %1019 = vmatprep.subr.mxu0 0.0
    %1020 = vmatpush1.msra.mxu0 0.0
    %1021 = vmatprep.subr.mxu0 0.0
    %1022 = vmatpush1.msra.mxu0 0.0
    %1023 = vmatprep.mubr.f32.mxu0 0.0
    %1024 = vmatmul.mubr.f32.gmra.mrb[0].mxu0 %v869
    %v1025 = vpop.f32.mrb[0].mxu0
    %v1026 = vadd.f32 0.0, %v1025
    %v1027 = vpop.f32.mrb[0].mxu0
    %1028 = vdwg.mxu0
    %1029 = vmatprep.subr.mxu0 0.0
    %1030 = vmatpush1.msra.mxu0 %v74
    %1031 = vmatprep.subr.mxu0 0.0
    %1032 = vmatpush1.msra.mxu0 %v75
    %1033 = vmatprep.subr.mxu0 0.0
    %1034 = vmatpush1.msra.mxu0 %v76
    %1035 = vmatprep.subr.mxu0 0.0
    %1036 = vmatpush1.msra.mxu0 %v77
    %1037 = vmatprep.subr.mxu0 0.0
    %1038 = vmatpush1.msra.mxu0 %v78
    %1039 = vmatprep.subr.mxu0 0.0
    %1040 = vmatpush1.msra.mxu0 %v79
    %1041 = vmatprep.subr.mxu0 0.0
    %1042 = vmatpush1.msra.mxu0 %v80
    %1043 = vmatprep.subr.mxu0 0.0
    %1044 = vmatpush1.msra.mxu0 %v81
    %1045 = vmatprep.subr.mxu0 0.0
    %1046 = vmatpush1.msra.mxu0 %v82
    %1047 = vmatprep.subr.mxu0 0.0
    %1048 = vmatpush1.msra.mxu0 %v83
    %1049 = vmatprep.subr.mxu0 0.0
    %1050 = vmatpush1.msra.mxu0 %v84
    %1051 = vmatprep.subr.mxu0 0.0
    %1052 = vmatpush1.msra.mxu0 %v85
    %1053 = vmatprep.subr.mxu0 0.0
    %1054 = vmatpush1.msra.mxu0 %v86
    %1055 = vmatprep.subr.mxu0 0.0
    %1056 = vmatpush1.msra.mxu0 %v87
    %1057 = vmatprep.subr.mxu0 0.0
    %1058 = vmatpush1.msra.mxu0 %v88
    %1059 = vmatprep.subr.mxu0 0.0
    %1060 = vmatpush1.msra.mxu0 %v89
    %1061 = vmatprep.subr.mxu0 0.0
    %1062 = vmatpush1.msra.mxu0 0.0
    %1063 = vmatprep.subr.mxu0 0.0
    %1064 = vmatpush1.msra.mxu0 0.0
    %1065 = vmatprep.subr.mxu0 0.0
    %1066 = vmatpush1.msra.mxu0 0.0
    %1067 = vmatprep.subr.mxu0 0.0
    %1068 = vmatpush1.msra.mxu0 0.0
    %1069 = vmatprep.subr.mxu0 0.0
    %1070 = vmatpush1.msra.mxu0 0.0
    %1071 = vmatprep.subr.mxu0 0.0
    %1072 = vmatpush1.msra.mxu0 0.0
    %1073 = vmatprep.subr.mxu0 0.0
    %1074 = vmatpush1.msra.mxu0 0.0
    %1075 = vmatprep.subr.mxu0 0.0
    %1076 = vmatpush1.msra.mxu0 0.0
    %1077 = vmatprep.subr.mxu0 0.0
    %1078 = vmatpush1.msra.mxu0 0.0
    %1079 = vmatprep.subr.mxu0 0.0
    %1080 = vmatpush1.msra.mxu0 0.0
    %1081 = vmatprep.subr.mxu0 0.0
    %1082 = vmatpush1.msra.mxu0 0.0
    %1083 = vmatprep.subr.mxu0 0.0
    %1084 = vmatpush1.msra.mxu0 0.0
    %1085 = vmatprep.subr.mxu0 0.0
    %1086 = vmatpush1.msra.mxu0 0.0
    %1087 = vmatprep.subr.mxu0 0.0
    %1088 = vmatpush1.msra.mxu0 0.0
    %1089 = vmatprep.subr.mxu0 0.0
    %1090 = vmatpush1.msra.mxu0 0.0
    %1091 = vmatprep.subr.mxu0 0.0
    %1092 = vmatpush1.msra.mxu0 0.0
    %1093 = vmatprep.mubr.f32.mxu0 0.0
    %1094 = vmatmul.mubr.f32.gmra.mrb[0].mxu0 %v877
    %v1095 = vpop.f32.mrb[0].mxu0
    %v1096 = vadd.f32 0.0, %v1095
    %v1097 = vpop.f32.mrb[0].mxu0
    %1098 = vdwg.mxu0
    %1099 = vmatprep.subr.mxu0 0.0
    %1100 = vmatpush1.msra.mxu0 %v90
    %1101 = vmatprep.subr.mxu0 0.0
    %1102 = vmatpush1.msra.mxu0 %v91
    %1103 = vmatprep.subr.mxu0 0.0
    %1104 = vmatpush1.msra.mxu0 %v92
    %1105 = vmatprep.subr.mxu0 0.0
    %1106 = vmatpush1.msra.mxu0 %v93
    %1107 = vmatprep.subr.mxu0 0.0
    %1108 = vmatpush1.msra.mxu0 %v94
    %1109 = vmatprep.subr.mxu0 0.0
    %1110 = vmatpush1.msra.mxu0 %v95
    %1111 = vmatprep.subr.mxu0 0.0
    %1112 = vmatpush1.msra.mxu0 %v96
    %1113 = vmatprep.subr.mxu0 0.0
    %1114 = vmatpush1.msra.mxu0 %v97
    %1115 = vmatprep.subr.mxu0 0.0
    %1116 = vmatpush1.msra.mxu0 %v98
    %1117 = vmatprep.subr.mxu0 0.0
    %1118 = vmatpush1.msra.mxu0 %v99
    %1119 = vmatprep.subr.mxu0 0.0
    %1120 = vmatpush1.msra.mxu0 %v100
    %1121 = vmatprep.subr.mxu0 0.0
    %1122 = vmatpush1.msra.mxu0 %v101
    %1123 = vmatprep.subr.mxu0 0.0
    %1124 = vmatpush1.msra.mxu0 %v102
    %1125 = vmatprep.subr.mxu0 0.0
    %1126 = vmatpush1.msra.mxu0 %v103
    %1127 = vmatprep.subr.mxu0 0.0
    %1128 = vmatpush1.msra.mxu0 %v104
    %1129 = vmatprep.subr.mxu0 0.0
    %1130 = vmatpush1.msra.mxu0 %v105
    %1131 = vmatprep.subr.mxu0 0.0
    %1132 = vmatpush1.msra.mxu0 0.0
    %1133 = vmatprep.subr.mxu0 0.0
    %1134 = vmatpush1.msra.mxu0 0.0
    %1135 = vmatprep.subr.mxu0 0.0
    %1136 = vmatpush1.msra.mxu0 0.0
    %1137 = vmatprep.subr.mxu0 0.0
    %1138 = vmatpush1.msra.mxu0 0.0
    %1139 = vmatprep.subr.mxu0 0.0
    %1140 = vmatpush1.msra.mxu0 0.0
    %1141 = vmatprep.subr.mxu0 0.0
    %1142 = vmatpush1.msra.mxu0 0.0
    %1143 = vmatprep.subr.mxu0 0.0
    %1144 = vmatpush1.msra.mxu0 0.0
    %1145 = vmatprep.subr.mxu0 0.0
    %1146 = vmatpush1.msra.mxu0 0.0
    %1147 = vmatprep.subr.mxu0 0.0
    %1148 = vmatpush1.msra.mxu0 0.0
    %1149 = vmatprep.subr.mxu0 0.0
    %1150 = vmatpush1.msra.mxu0 0.0
    %1151 = vmatprep.subr.mxu0 0.0
    %1152 = vmatpush1.msra.mxu0 0.0
    %1153 = vmatprep.subr.mxu0 0.0
    %1154 = vmatpush1.msra.mxu0 0.0
    %1155 = vmatprep.subr.mxu0 0.0
    %1156 = vmatpush1.msra.mxu0 0.0
    %1157 = vmatprep.subr.mxu0 0.0
    %1158 = vmatpush1.msra.mxu0 0.0
    %1159 = vmatprep.subr.mxu0 0.0
    %1160 = vmatpush1.msra.mxu0 0.0
    %1161 = vmatprep.subr.mxu0 0.0
    %1162 = vmatpush1.msra.mxu0 0.0
    %1163 = vmatprep.mubr.f32.mxu0 0.0
    %1164 = vmatmul.mubr.f32.gmra.mrb[0].mxu0 %v879
    %v1165 = vpop.f32.mrb[0].mxu0
    %v1166 = vadd.f32 0.0, %v1165
    %v1167 = vpop.f32.mrb[0].mxu0
    %1168 = vdwg.mxu0
    %1169 = vmatprep.subr.mxu0 0.0
    %1170 = vmatpush1.msra.mxu0 %v106
    %1171 = vmatprep.subr.mxu0 0.0
    %1172 = vmatpush1.msra.mxu0 %v107
    %1173 = vmatprep.subr.mxu0 0.0
    %1174 = vmatpush1.msra.mxu0 %v108
    %1175 = vmatprep.subr.mxu0 0.0
    %1176 = vmatpush1.msra.mxu0 %v109
    %1177 = vmatprep.subr.mxu0 0.0
    %1178 = vmatpush1.msra.mxu0 %v110
    %1179 = vmatprep.subr.mxu0 0.0
    %1180 = vmatpush1.msra.mxu0 %v111
    %1181 = vmatprep.subr.mxu0 0.0
    %1182 = vmatpush1.msra.mxu0 %v112
    %1183 = vmatprep.subr.mxu0 0.0
    %1184 = vmatpush1.msra.mxu0 %v113
    %1185 = vmatprep.subr.mxu0 0.0
    %1186 = vmatpush1.msra.mxu0 %v114
    %1187 = vmatprep.subr.mxu0 0.0
    %1188 = vmatpush1.msra.mxu0 %v115
    %1189 = vmatprep.subr.mxu0 0.0
    %1190 = vmatpush1.msra.mxu0 %v116
    %1191 = vmatprep.subr.mxu0 0.0
    %1192 = vmatpush1.msra.mxu0 %v117
    %1193 = vmatprep.subr.mxu0 0.0
    %1194 = vmatpush1.msra.mxu0 %v118
    %1195 = vmatprep.subr.mxu0 0.0
    %1196 = vmatpush1.msra.mxu0 %v119
    %1197 = vmatprep.subr.mxu0 0.0
    %1198 = vmatpush1.msra.mxu0 %v120
    %1199 = vmatprep.subr.mxu0 0.0
    %1200 = vmatpush1.msra.mxu0 %v121
    %1201 = vmatprep.subr.mxu0 0.0
    %1202 = vmatpush1.msra.mxu0 0.0
    %1203 = vmatprep.subr.mxu0 0.0
    %1204 = vmatpush1.msra.mxu0 0.0
    %1205 = vmatprep.subr.mxu0 0.0
    %1206 = vmatpush1.msra.mxu0 0.0
    %1207 = vmatprep.subr.mxu0 0.0
    %1208 = vmatpush1.msra.mxu0 0.0
    %1209 = vmatprep.subr.mxu0 0.0
    %1210 = vmatpush1.msra.mxu0 0.0
    %1211 = vmatprep.subr.mxu0 0.0
    %1212 = vmatpush1.msra.mxu0 0.0
    %1213 = vmatprep.subr.mxu0 0.0
    %1214 = vmatpush1.msra.mxu0 0.0
    %1215 = vmatprep.subr.mxu0 0.0
    %1216 = vmatpush1.msra.mxu0 0.0
    %1217 = vmatprep.subr.mxu0 0.0
    %1218 = vmatpush1.msra.mxu0 0.0
    %1219 = vmatprep.subr.mxu0 0.0
    %1220 = vmatpush1.msra.mxu0 0.0
    %1221 = vmatprep.subr.mxu0 0.0
    %1222 = vmatpush1.msra.mxu0 0.0
    %1223 = vmatprep.subr.mxu0 0.0
    %1224 = vmatpush1.msra.mxu0 0.0
    %1225 = vmatprep.subr.mxu0 0.0
    %1226 = vmatpush1.msra.mxu0 0.0
    %1227 = vmatprep.subr.mxu0 0.0
    %1228 = vmatpush1.msra.mxu0 0.0
    %1229 = vmatprep.subr.mxu0 0.0
    %1230 = vmatpush1.msra.mxu0 0.0
    %1231 = vmatprep.subr.mxu0 0.0
    %1232 = vmatpush1.msra.mxu0 0.0
    %1233 = vmatprep.mubr.f32.mxu0 0.0
    %1234 = vmatmul.mubr.f32.gmra.mrb[0].mxu0 %v862
    %v1235 = vpop.f32.mrb[0].mxu0
    %v1236 = vadd.f32 0.0, %v1235
    %v1237 = vpop.f32.mrb[0].mxu0
    %1238 = vdwg.mxu0
    %1239 = vmatprep.subr.mxu0 0.0
    %1240 = vmatpush1.msra.mxu0 %v122
    %1241 = vmatprep.subr.mxu0 0.0
    %1242 = vmatpush1.msra.mxu0 %v123
    %1243 = vmatprep.subr.mxu0 0.0
    %1244 = vmatpush1.msra.mxu0 %v124
    %1245 = vmatprep.subr.mxu0 0.0
    %1246 = vmatpush1.msra.mxu0 %v125
    %1247 = vmatprep.subr.mxu0 0.0
    %1248 = vmatpush1.msra.mxu0 %v126
    %1249 = vmatprep.subr.mxu0 0.0
    %1250 = vmatpush1.msra.mxu0 %v127
    %1251 = vmatprep.subr.mxu0 0.0
    %1252 = vmatpush1.msra.mxu0 %v128
    %1253 = vmatprep.subr.mxu0 0.0
    %1254 = vmatpush1.msra.mxu0 %v129
    %1255 = vmatprep.subr.mxu0 0.0
    %1256 = vmatpush1.msra.mxu0 %v130
    %1257 = vmatprep.subr.mxu0 0.0
    %1258 = vmatpush1.msra.mxu0 %v131
    %1259 = vmatprep.subr.mxu0 0.0
    %1260 = vmatpush1.msra.mxu0 %v132
    %1261 = vmatprep.subr.mxu0 0.0
    %1262 = vmatpush1.msra.mxu0 %v133
    %1263 = vmatprep.subr.mxu0 0.0
    %1264 = vmatpush1.msra.mxu0 %v134
    %1265 = vmatprep.subr.mxu0 0.0
    %1266 = vmatpush1.msra.mxu0 %v135
    %1267 = vmatprep.subr.mxu0 0.0
    %1268 = vmatpush1.msra.mxu0 %v136
    %1269 = vmatprep.subr.mxu0 0.0
    %1270 = vmatpush1.msra.mxu0 %v137
    %1271 = vmatprep.subr.mxu0 0.0
    %1272 = vmatpush1.msra.mxu0 0.0
    %1273 = vmatprep.subr.mxu0 0.0
    %1274 = vmatpush1.msra.mxu0 0.0
    %1275 = vmatprep.subr.mxu0 0.0
    %1276 = vmatpush1.msra.mxu0 0.0
    %1277 = vmatprep.subr.mxu0 0.0
    %1278 = vmatpush1.msra.mxu0 0.0
    %1279 = vmatprep.subr.mxu0 0.0
    %1280 = vmatpush1.msra.mxu0 0.0
    %1281 = vmatprep.subr.mxu0 0.0
    %1282 = vmatpush1.msra.mxu0 0.0
    %1283 = vmatprep.subr.mxu0 0.0
    %1284 = vmatpush1.msra.mxu0 0.0
    %1285 = vmatprep.subr.mxu0 0.0
    %1286 = vmatpush1.msra.mxu0 0.0
    %1287 = vmatprep.subr.mxu0 0.0
    %1288 = vmatpush1.msra.mxu0 0.0
    %1289 = vmatprep.subr.mxu0 0.0
    %1290 = vmatpush1.msra.mxu0 0.0
    %1291 = vmatprep.subr.mxu0 0.0
    %1292 = vmatpush1.msra.mxu0 0.0
    %1293 = vmatprep.subr.mxu0 0.0
    %1294 = vmatpush1.msra.mxu0 0.0
    %1295 = vmatprep.subr.mxu0 0.0
    %1296 = vmatpush1.msra.mxu0 0.0
    %1297 = vmatprep.subr.mxu0 0.0
    %1298 = vmatpush1.msra.mxu0 0.0
    %1299 = vmatprep.subr.mxu0 0.0
    %1300 = vmatpush1.msra.mxu0 0.0
    %1301 = vmatprep.subr.mxu0 0.0
    %1302 = vmatpush1.msra.mxu0 0.0
    %1303 = vmatprep.mubr.f32.mxu0 0.0
    %1304 = vmatmul.mubr.f32.gmra.mrb[0].mxu0 %v876
    %v1305 = vpop.f32.mrb[0].mxu0
    %v1306 = vadd.f32 0.0, %v1305
    %v1307 = vpop.f32.mrb[0].mxu0
    %1308 = vdwg.mxu0
    %1309 = vmatprep.subr.mxu0 0.0
    %1310 = vmatpush1.msra.mxu0 %v138
    %1311 = vmatprep.subr.mxu0 0.0
    %1312 = vmatpush1.msra.mxu0 %v139
    %1313 = vmatprep.subr.mxu0 0.0
    %1314 = vmatpush1.msra.mxu0 %v140
    %1315 = vmatprep.subr.mxu0 0.0
    %1316 = vmatpush1.msra.mxu0 %v141
    %1317 = vmatprep.subr.mxu0 0.0
    %1318 = vmatpush1.msra.mxu0 %v142
    %1319 = vmatprep.subr.mxu0 0.0
    %1320 = vmatpush1.msra.mxu0 %v143
    %1321 = vmatprep.subr.mxu0 0.0
    %1322 = vmatpush1.msra.mxu0 %v144
    %1323 = vmatprep.subr.mxu0 0.0
    %1324 = vmatpush1.msra.mxu0 %v145
    %1325 = vmatprep.subr.mxu0 0.0
    %1326 = vmatpush1.msra.mxu0 %v146
    %1327 = vmatprep.subr.mxu0 0.0
    %1328 = vmatpush1.msra.mxu0 %v147
    %1329 = vmatprep.subr.mxu0 0.0
    %1330 = vmatpush1.msra.mxu0 %v148
    %1331 = vmatprep.subr.mxu0 0.0
    %1332 = vmatpush1.msra.mxu0 %v149
    %1333 = vmatprep.subr.mxu0 0.0
    %1334 = vmatpush1.msra.mxu0 %v150
    %1335 = vmatprep.subr.mxu0 0.0
    %1336 = vmatpush1.msra.mxu0 %v151
    %1337 = vmatprep.subr.mxu0 0.0
    %1338 = vmatpush1.msra.mxu0 %v152
    %1339 = vmatprep.subr.mxu0 0.0
    %1340 = vmatpush1.msra.mxu0 %v153
    %1341 = vmatprep.subr.mxu0 0.0
    %1342 = vmatpush1.msra.mxu0 0.0
    %1343 = vmatprep.subr.mxu0 0.0
    %1344 = vmatpush1.msra.mxu0 0.0
    %1345 = vmatprep.subr.mxu0 0.0
    %1346 = vmatpush1.msra.mxu0 0.0
    %1347 = vmatprep.subr.mxu0 0.0
    %1348 = vmatpush1.msra.mxu0 0.0
    %1349 = vmatprep.subr.mxu0 0.0
    %1350 = vmatpush1.msra.mxu0 0.0
    %1351 = vmatprep.subr.mxu0 0.0
    %1352 = vmatpush1.msra.mxu0 0.0
    %1353 = vmatprep.subr.mxu0 0.0
    %1354 = vmatpush1.msra.mxu0 0.0
    %1355 = vmatprep.subr.mxu0 0.0
    %1356 = vmatpush1.msra.mxu0 0.0
    %1357 = vmatprep.subr.mxu0 0.0
    %1358 = vmatpush1.msra.mxu0 0.0
    %1359 = vmatprep.subr.mxu0 0.0
    %1360 = vmatpush1.msra.mxu0 0.0
    %1361 = vmatprep.subr.mxu0 0.0
    %1362 = vmatpush1.msra.mxu0 0.0
    %1363 = vmatprep.subr.mxu0 0.0
    %1364 = vmatpush1.msra.mxu0 0.0
    %1365 = vmatprep.subr.mxu0 0.0
    %1366 = vmatpush1.msra.mxu0 0.0
    %1367 = vmatprep.subr.mxu0 0.0
    %1368 = vmatpush1.msra.mxu0 0.0
    %1369 = vmatprep.subr.mxu0 0.0
    %1370 = vmatpush1.msra.mxu0 0.0
    %1371 = vmatprep.subr.mxu0 0.0
    %1372 = vmatpush1.msra.mxu0 0.0
    %1373 = vmatprep.mubr.f32.mxu0 0.0
    %1374 = vmatmul.mubr.f32.gmra.mrb[0].mxu0 %v878
    %v1375 = vpop.f32.mrb[0].mxu0
    %v1376 = vadd.f32 0.0, %v1375
    %v1377 = vpop.f32.mrb[0].mxu0
    %1378 = vdwg.mxu0
    %1379 = vmatprep.subr.mxu0 0.0
    %1380 = vmatpush1.msra.mxu0 %v154
    %1381 = vmatprep.subr.mxu0 0.0
    %1382 = vmatpush1.msra.mxu0 %v155
    %1383 = vmatprep.subr.mxu0 0.0
    %1384 = vmatpush1.msra.mxu0 %v156
    %1385 = vmatprep.subr.mxu0 0.0
    %1386 = vmatpush1.msra.mxu0 %v157
    %1387 = vmatprep.subr.mxu0 0.0
    %1388 = vmatpush1.msra.mxu0 %v158
    %1389 = vmatprep.subr.mxu0 0.0
    %1390 = vmatpush1.msra.mxu0 %v159
    %1391 = vmatprep.subr.mxu0 0.0
    %1392 = vmatpush1.msra.mxu0 %v160
    %1393 = vmatprep.subr.mxu0 0.0
    %1394 = vmatpush1.msra.mxu0 %v161
    %1395 = vmatprep.subr.mxu0 0.0
    %1396 = vmatpush1.msra.mxu0 %v162
    %1397 = vmatprep.subr.mxu0 0.0
    %1398 = vmatpush1.msra.mxu0 %v163
    %1399 = vmatprep.subr.mxu0 0.0
    %1400 = vmatpush1.msra.mxu0 %v164
    %1401 = vmatprep.subr.mxu0 0.0
    %1402 = vmatpush1.msra.mxu0 %v165
    %1403 = vmatprep.subr.mxu0 0.0
    %1404 = vmatpush1.msra.mxu0 %v166
    %1405 = vmatprep.subr.mxu0 0.0
    %1406 = vmatpush1.msra.mxu0 %v167
    %1407 = vmatprep.subr.mxu0 0.0
    %1408 = vmatpush1.msra.mxu0 %v168
    %1409 = vmatprep.subr.mxu0 0.0
    %1410 = vmatpush1.msra.mxu0 %v169
    %1411 = vmatprep.subr.mxu0 0.0
    %1412 = vmatpush1.msra.mxu0 0.0
    %1413 = vmatprep.subr.mxu0 0.0
    %1414 = vmatpush1.msra.mxu0 0.0
    %1415 = vmatprep.subr.mxu0 0.0
    %1416 = vmatpush1.msra.mxu0 0.0
    %1417 = vmatprep.subr.mxu0 0.0
    %1418 = vmatpush1.msra.mxu0 0.0
    %1419 = vmatprep.subr.mxu0 0.0
    %1420 = vmatpush1.msra.mxu0 0.0
    %1421 = vmatprep.subr.mxu0 0.0
    %1422 = vmatpush1.msra.mxu0 0.0
    %1423 = vmatprep.subr.mxu0 0.0
    %1424 = vmatpush1.msra.mxu0 0.0
    %1425 = vmatprep.subr.mxu0 0.0
    %1426 = vmatpush1.msra.mxu0 0.0
    %1427 = vmatprep.subr.mxu0 0.0
    %1428 = vmatpush1.msra.mxu0 0.0
    %1429 = vmatprep.subr.mxu0 0.0
    %1430 = vmatpush1.msra.mxu0 0.0
    %1431 = vmatprep.subr.mxu0 0.0
    %1432 = vmatpush1.msra.mxu0 0.0
    %1433 = vmatprep.subr.mxu0 0.0
    %1434 = vmatpush1.msra.mxu0 0.0
    %1435 = vmatprep.subr.mxu0 0.0
    %1436 = vmatpush1.msra.mxu0 0.0
    %1437 = vmatprep.subr.mxu0 0.0
    %1438 = vmatpush1.msra.mxu0 0.0
    %1439 = vmatprep.subr.mxu0 0.0
    %1440 = vmatpush1.msra.mxu0 0.0
    %1441 = vmatprep.subr.mxu0 0.0
    %1442 = vmatpush1.msra.mxu0 0.0
    %1443 = vmatprep.mubr.f32.mxu0 0.0
    %1444 = vmatmul.mubr.f32.gmra.mrb[0].mxu0 %v880
    %v1445 = vpop.f32.mrb[0].mxu0
    %v1446 = vadd.f32 0.0, %v1445
    %v1447 = vpop.f32.mrb[0].mxu0
    %1448 = vdwg.mxu0
    %v1457 = vrot.slane %v1026, 7
    %v1458 = vsel %vm800, %v1457, %v956
    %v1459 = vrot.slane %v1096, 6
    %v1460 = vsel %vm803, %v1459, %v1458
    %v1461 = vrot.slane %v1166, 5
    %v1462 = vsel %vm806, %v1461, %v1460
    %v1463 = vrot.slane %v1236, 4
    %v1464 = vsel %vm809, %v1463, %v1462
    %v1465 = vrot.slane %v1306, 3
    %v1466 = vsel %vm812, %v1465, %v1464
    %v1467 = vrot.slane %v1376, 2
    %v1468 = vsel %vm815, %v1467, %v1466
    %v1469 = vrot.slane %v1446, 1
    %v1470 = vsel %vm818, %v1469, %v1468
    %1472 = vst [vmem:[#allocation7] sm:$0xff] %v1470
    %1473 = vst [vmem:[#allocation8] sm:$0xff] %v830
    // Predicated region
    $region18: #{tpu_custom_call.1} parent=1 // pred_check
      _
    $region19: #{tpu_custom_call.1} parent=1 // pred_check_branch
      %1475 = sbr.rel (0) target = $region21
    $region20: #{tpu_custom_call.1} parent=1 // pred_region
      %s1477 = ssub.s32 128, 128
      %1478 = vsyncadd [#allocation4], %s1477
      %s1480 = sshll.u32 [#allocation7], 4
      %s1481 = int_to_ptr.vmem [resolvable:$true] %s1480
      %1483 = dma.vmem_to_hbm [thread:$0]  %s1481, 128, %s2, [#allocation4]
    $region21: #{tpu_custom_call.1} parent=1 // pred_fallthru
      _
    // Predicated region
    $region22: #{tpu_custom_call.1} parent=1 // pred_check
      _
    $region23: #{tpu_custom_call.1} parent=1 // pred_check_branch
      %1485 = sbr.rel (0) target = $region25
    $region24: #{tpu_custom_call.1} parent=1 // pred_region
      %s1487 = ssub.s32 128, 128
      %1488 = vsyncadd [#allocation9], %s1487
      %s1490 = sshll.u32 [#allocation8], 4
      %s1491 = int_to_ptr.vmem [resolvable:$true] %s1490
      %1493 = dma.vmem_to_hbm [thread:$0]  %s1491, 128, %s3, [#allocation9]
    $region25: #{tpu_custom_call.1} parent=1 // pred_fallthru
      _
    // Predicated region
    $region26: #{tpu_custom_call.1} parent=1 // pred_check
      _
    $region27: #{tpu_custom_call.1} parent=1 // pred_check_branch
      %1495 = sbr.rel (0) target = $region29
    $region28: #{tpu_custom_call.1} parent=1 // pred_region
      %1496 = dma.done [#allocation4], 128
    $region29: #{tpu_custom_call.1} parent=1 // pred_fallthru
      _
    // Predicated region
    $region30: #{tpu_custom_call.1} parent=1 // pred_check
      _
    $region31: #{tpu_custom_call.1} parent=1 // pred_check_branch
      %1498 = sbr.rel (0) target = $region33
    $region32: #{tpu_custom_call.1} parent=1 // pred_region
      %1499 = dma.done [#allocation9], 128
    $region33: #{tpu_custom_call.1} parent=1 // pred_fallthru
      _
    %1500 = vsyncpa [#allocation3], 1
    %1501 = vsyncpa [#allocation6], 1
    %1502 = vsyncpa [#allocation4], 1
    %1503 = vsyncpa [#allocation9], 1

</llo_original>
